<compile_context>
chip_gen: v7x
topology: tpu7x:2x2x1
jax: 0.10.0
libtpu: 0.0.40
codegen_flags: <defaults>
</compile_context>

<pallas_src>
import math

import jax
import jax.numpy as jnp
from jax.experimental import pallas as pl
from jax.experimental.pallas import tpu as pltpu

# ----------------------------- module hyper-params -----------------------------
TRANSFORMER_DIM = 32
NUM_CLASSES = 10
N_STEPS = 100
NHEAD = 2
DIM_FF = 64
LN_EPS = 1e-5
D4 = TRANSFORMER_DIM // 4
NEG_INF = -1e30

# weight-slab entry indices (each entry is a [64, 128] tile; real data sits in the top-left corner)
W_SA_QKV, W_SA_O, W_CA_Q, W_CA_KV, W_CA_O, W_FF1, W_FF2 = range(7)
N_WMATS = 7
W_ROWS, W_LANES = 64, 128
# vector-slab row indices
V_SA_B, V_SA_OB, V_CA_QB, V_CA_KVB, V_CA_OB, V_FF1B, V_FF2B = range(7)
V_N1, V_N2, V_N3, V_NF = 7, 9, 11, 13          # LayerNorm gamma row; beta is row + 1
V_ROWS, V_LANES = 16, 128


# ----------------------------- Pallas kernel -----------------------------
def _decoder_kernel(tgt_ref, mem_ref, smask_ref, cmask_ref, w_ref, v_ref, o_ref):
    D, DFF, HD = TRANSFORMER_DIM, DIM_FF, TRANSFORMER_DIM // NHEAD
    scale = 1.0 / math.sqrt(HD)

    x = tgt_ref[0]                    # (R, D)   folded (chunk_batch*L, D) target
    mem = mem_ref[0]                  # (Rk, D)  folded (chunk_batch*Lc, D) memory
    smask = smask_ref[...]            # (R, R)   block-diag causal additive mask (precomputed)
    cmask = cmask_ref[0]              # (R, Rk)  block-diag + key-padding additive mask
    vs = v_ref[...]                   # (16, 128) every bias / LN param as one slab

    def wmat(idx, rows, cols):        # static prefix slice of one weight tile
        return w_ref[idx][0:rows, 0:cols]

    def vrow(idx, cols):              # (1, cols) row of the vector slab, broadcasts over rows
        return vs[idx:idx + 1, 0:cols]

    def ln(v, row):
        mu = jnp.mean(v, axis=-1, keepdims=True)
        var = jnp.mean(jnp.square(v - mu), axis=-1, keepdims=True)
        return (v - mu) * jax.lax.rsqrt(var + LN_EPS) * vrow(row, D) + vrow(row + 1, D)

    def attention(q_src, q_base, kv_src, kv_base, mask, wo_idx, bo_idx):
        # q lives at q_src[:, q_base:q_base+D]; k at kv_src[:, kv_base:kv_base+D]; v follows k.
        heads = []
        for h in range(NHEAD):                                    # static unroll (NHEAD = 2)
            qh = q_src[:, q_base + h * HD:q_base + (h + 1) * HD]
            kh = kv_src[:, kv_base + h * HD:kv_base + (h + 1) * HD]
            vh = kv_src[:, kv_base + D + h * HD:kv_base + D + (h + 1) * HD]
            logits = jnp.dot(qh, kh.T, preferred_element_type=jnp.float32) * scale + mask
            m = jnp.max(logits, axis=-1, keepdims=True)
            p = jnp.exp(logits - m)
            p = p / jnp.sum(p, axis=-1, keepdims=True)
            heads.append(jnp.dot(p, vh, preferred_element_type=jnp.float32))
        ctx = jnp.concatenate(heads, axis=-1)                     # (R, D)
        return jnp.dot(ctx, wmat(wo_idx, D, D),
                       preferred_element_type=jnp.float32) + vrow(bo_idx, D)

    # --- self-attention: single fused QKV projection (one N = 3D matmul) ---
    qkv = jnp.dot(x, wmat(W_SA_QKV, D, 3 * D),
                  preferred_element_type=jnp.float32) + vrow(V_SA_B, 3 * D)
    h1 = ln(x + attention(qkv, 0, qkv, D, smask, W_SA_O, V_SA_OB), V_N1)

    # --- cross-attention: Q from target, fused KV projection of memory (one N = 2D matmul) ---
    qc = jnp.dot(h1, wmat(W_CA_Q, D, D),
                 preferred_element_type=jnp.float32) + vrow(V_CA_QB, D)
    kvc = jnp.dot(mem, wmat(W_CA_KV, D, 2 * D),
                  preferred_element_type=jnp.float32) + vrow(V_CA_KVB, 2 * D)
    h2 = ln(h1 + attention(qc, 0, kvc, 0, cmask, W_CA_O, V_CA_OB), V_N2)

    # --- feed-forward (ReLU) ---
    ff = jnp.maximum(jnp.dot(h2, wmat(W_FF1, D, DFF),
                             preferred_element_type=jnp.float32) + vrow(V_FF1B, DFF), 0.0)
    ff = jnp.dot(ff, wmat(W_FF2, DFF, D),
                 preferred_element_type=jnp.float32) + vrow(V_FF2B, D)
    h3 = ln(h2 + ff, V_N3)

    # --- decoder-final LayerNorm; the D->1 output layer runs lane-dense in the XLA wrapper ---
    o_ref[0] = ln(h3, V_NF).astype(o_ref.dtype)


# ----------------------------- host-side packing & masks -----------------------------
def _pack_weight_slabs(p):
    """Pack all projection matrices into one (7,64,128) slab and all vectors into (16,128)."""
    D = TRANSFORMER_DIM
    mats = [
        p['sa_w'].T,             # W_SA_QKV  (D, 3D)  fused q|k|v in-proj, self-attn
        p['sa_ow'].T,            # W_SA_O    (D, D)
        p['ca_w'][:D, :].T,      # W_CA_Q    (D, D)
        p['ca_w'][D:, :].T,      # W_CA_KV   (D, 2D)  fused k|v in-proj, cross-attn
        p['ca_ow'].T,            # W_CA_O    (D, D)
        p['ff_w1'].T,            # W_FF1     (D, DFF)
        p['ff_w2'].T,            # W_FF2     (DFF, D)
    ]
    wslab = jnp.zeros((N_WMATS, W_ROWS, W_LANES), jnp.float32)
    for i, m in enumerate(mats):
        wslab = wslab.at[i, :m.shape[0], :m.shape[1]].set(m.astype(jnp.float32))

    vecs = [
        p['sa_b'], p['sa_ob'], p['ca_b'][:D], p['ca_b'][D:], p['ca_ob'],
        p['ff_b1'], p['ff_b2'],
        p['n1_g'], p['n1_b'], p['n2_g'], p['n2_b'],
        p['n3_g'], p['n3_b'], p['nf_g'], p['nf_b'],
    ]
    vslab = jnp.zeros((V_ROWS, V_LANES), jnp.float32)
    for i, v in enumerate(vecs):
        vslab = vslab.at[i, :v.shape[0]].set(v.astype(jnp.float32))
    return wslab, vslab


def _self_mask(cb, L):
    """Block-diagonal causal additive mask for `cb` batch elements folded into (cb*L) rows."""
    R = cb * L
    r = jnp.arange(R)
    same = (r[:, None] // L) == (r[None, :] // L)
    causal = (r[None, :] % L) <= (r[:, None] % L)
    return jnp.where(same & causal, 0.0, NEG_INF).astype(jnp.float32)


def _cross_mask(non_padding_mask, cb, L, Lc):
    """Per-chunk block-diagonal mask plus the additive memory key-padding mask."""
    B = non_padding_mask.shape[0]
    nchunks = B // cb
    R, Rk = cb * L, cb * Lc
    rq = jnp.arange(R)
    rk = jnp.arange(Rk)
    block = jnp.where((rq[:, None] // L) == (rk[None, :] // Lc), 0.0, NEG_INF)
    kpm = non_padding_mask.astype(jnp.float32).reshape(nchunks, 1, Rk)
    return block[None].astype(jnp.float32) + kpm                  # (nchunks, R, Rk)


# ----------------------------- pallas_call wrapper -----------------------------
def decoder_forward(tgt, memory, non_padding_mask, params, batch_chunk=None):
    B, L, D = tgt.shape
    _, Lc, _ = memory.shape
    # Fold the batch into as few grid steps as possible (per-grid-step overhead dominates at
    # these sizes).  On a 2-TensorCore chip (v7x) pass batch_chunk=B//2 to get a 2-wide
    # "parallel" grid so both cores get work.
    cb = B if batch_chunk is None else batch_chunk
    assert B % cb == 0, "batch must be divisible by batch_chunk"
    nchunks = B // cb
    R, Rk = cb * L, cb * Lc

    wslab, vslab = _pack_weight_slabs(params)
    smask = _self_mask(cb, L)
    cmask = _cross_mask(non_padding_mask, cb, L, Lc)
    tgt_f = tgt.astype(jnp.float32).reshape(nchunks, R, D)
    mem_f = memory.astype(jnp.float32).reshape(nchunks, Rk, D)

    h4 = pl.pallas_call(
        _decoder_kernel,
        out_shape=jax.ShapeDtypeStruct((nchunks, R, D), jnp.float32),
        grid=(nchunks,),
        in_specs=[
            pl.BlockSpec((1, R, D), lambda c: (c, 0, 0)),          # folded target
            pl.BlockSpec((1, Rk, D), lambda c: (c, 0, 0)),         # folded memory
            pl.BlockSpec((R, R), lambda c: (0, 0)),                # self-attn mask (shared)
            pl.BlockSpec((1, R, Rk), lambda c: (c, 0, 0)),         # cross-attn mask
            pl.BlockSpec((N_WMATS, W_ROWS, W_LANES), lambda c: (0, 0, 0)),  # weight slab
            pl.BlockSpec((V_ROWS, V_LANES), lambda c: (0, 0)),     # bias / LN slab
        ],
        out_specs=pl.BlockSpec((1, R, D), lambda c: (c, 0, 0)),
        compiler_params=pltpu.CompilerParams(dimension_semantics=("parallel",)),
    )(tgt_f, mem_f, smask, cmask, wslab, vslab)

    h4 = h4.reshape(B, L, D)
    # output_layer Linear(D, 1) — lane-dense matmul in XLA instead of a width-1 masked store.
    return h4 @ params['out_w'].T + params['out_b']


# ----------------------------- XLA glue (encodings, embeddings, MLP) -----------------------------
def continuous_sinusoidal_pos_emb(t, dim, n_steps):
    half = dim // 2
    freqs = jnp.exp(-math.log(10000.0) * jnp.arange(half, dtype=jnp.float32) / (half - 1))
    args = t.astype(jnp.float32)[:, None] * float(n_steps) * freqs[None, :]
    return jnp.concatenate([jnp.sin(args), jnp.cos(args)], axis=-1)


def mlp_forward(t_emb, w1, b1, w2, b2):
    """Linear -> Softplus -> Linear in plain XLA (too small to be worth a kernel launch)."""
    h = t_emb @ w1.T + b1
    h = jnp.where(h > 20.0, h, jnp.log1p(jnp.exp(jnp.minimum(h, 20.0))))   # Softplus(beta=1, thr=20)
    return h @ w2.T + b2


def sin_cos_enc(seq, vec):
    """result[..., i] = sin(seq / vec[i]) for even i, cos(...) for odd i."""
    r = seq.astype(jnp.float32)[..., None] / vec
    idx = jnp.arange(vec.shape[0])
    return jnp.where(idx % 2 == 0, jnp.sin(r), jnp.cos(r))


def build_tgt(x, e, t_feat, params):
    B, L = x.shape
    order = jnp.broadcast_to(jnp.arange(L, dtype=jnp.float32)[None, :], (B, L))
    order_e = sin_cos_enc(order, params['order_vec'])                 # (B, L, 32)
    x_e = sin_cos_enc(x, params['position_vec'])                      # (B, L, 8)
    e_e = jnp.take(params['event_emb'], e, axis=0)                    # (B, L, 8)
    t_e = jnp.broadcast_to(t_feat[:, None, :], (B, L, D4))            # (B, L, 8)
    return jnp.concatenate([x_e, x_e, e_e, t_e], axis=-1) + order_e   # (B, L, 32)


def time_denoising_forward(x, e, t, hist, non_padding_mask, params, batch_chunk=None):
    t_emb = continuous_sinusoidal_pos_emb(t, D4, N_STEPS)
    t_feat = mlp_forward(t_emb, params['mlp_w1'], params['mlp_b1'],
                         params['mlp_w2'], params['mlp_b2'])
    tgt = build_tgt(x, e, t_feat, params)
    return decoder_forward(tgt, hist, non_padding_mask, params, batch_chunk=batch_chunk)


# ----------------------------- pure-jnp reference (per-batch, PyTorch-layer math) -----------------------------
def _ref_decoder_one(x, mem, kpm, p):
    D, HD = TRANSFORMER_DIM, TRANSFORMER_DIM // NHEAD
    scale = 1.0 / math.sqrt(HD)

    def ln(v, g, b):
        mu = jnp.mean(v, axis=-1, keepdims=True)
        var = jnp.mean(jnp.square(v - mu), axis=-1, keepdims=True)
        return (v - mu) * jax.lax.rsqrt(var + LN_EPS) * g + b

    def mha(q_in, kv_in, w, b, ow, ob, add_mask):
        q = q_in @ w[0:D].T + b[0:D]
        k = kv_in @ w[D:2 * D].T + b[D:2 * D]
        v = kv_in @ w[2 * D:3 * D].T + b[2 * D:3 * D]
        outs = []
        for h in range(NHEAD):
            sl = slice(h * HD, (h + 1) * HD)
            logits = q[:, sl] @ k[:, sl].T * scale + add_mask
            m = jnp.max(logits, axis=-1, keepdims=True)
            pr = jnp.exp(logits - m)
            pr = pr / jnp.sum(pr, axis=-1, keepdims=True)
            outs.append(pr @ v[:, sl])
        return jnp.concatenate(outs, axis=-1) @ ow.T + ob

    L = x.shape[0]
    causal = jnp.where(jnp.arange(L)[None, :] <= jnp.arange(L)[:, None], 0.0, NEG_INF)
    h1 = ln(x + mha(x, x, p['sa_w'], p['sa_b'], p['sa_ow'], p['sa_ob'], causal),
            p['n1_g'], p['n1_b'])
    h2 = ln(h1 + mha(h1, mem, p['ca_w'], p['ca_b'], p['ca_ow'], p['ca_ob'], kpm[None, :]),
            p['n2_g'], p['n2_b'])
    ff = jnp.maximum(h2 @ p['ff_w1'].T + p['ff_b1'], 0.0) @ p['ff_w2'].T + p['ff_b2']
    h3 = ln(h2 + ff, p['n3_g'], p['n3_b'])
    h4 = ln(h3, p['nf_g'], p['nf_b'])
    return h4 @ p['out_w'].T + p['out_b']


def reference_forward(x, e, t, hist, non_padding_mask, params):
    t_emb = continuous_sinusoidal_pos_emb(t, D4, N_STEPS)
    t_feat = mlp_forward(t_emb, params['mlp_w1'], params['mlp_b1'],
                         params['mlp_w2'], params['mlp_b2'])
    tgt = build_tgt(x, e, t_feat, params)
    kpm = non_padding_mask.astype(jnp.float32)
    return jax.vmap(lambda xb, mb, kb: _ref_decoder_one(xb, mb, kb, params))(tgt, hist, kpm)


# ----------------------------- deterministic parameter init -----------------------------
def init_params(key):
    d, d4, dff, nc = TRANSFORMER_DIM, D4, DIM_FF, NUM_CLASSES
    keys = jax.random.split(key, 16)

    def lin(k, out_f, in_f):
        k1, k2 = jax.random.split(k)
        bound = 1.0 / math.sqrt(in_f)
        w = jax.random.uniform(k1, (out_f, in_f), jnp.float32, -bound, bound)
        b = jax.random.uniform(k2, (out_f,), jnp.float32, -bound, bound)
        return w, b

    def ln_init(k):
        k1, k2 = jax.random.split(k)
        return (1.0 + 0.05 * jax.random.normal(k1, (d,), jnp.float32),
                0.05 * jax.random.normal(k2, (d,), jnp.float32))

    p = {}
    p['mlp_w1'], p['mlp_b1'] = lin(keys[0], d, d4)          # Linear(8, 32)
    p['mlp_w2'], p['mlp_b2'] = lin(keys[1], d4, d)          # Linear(32, 8)
    p['sa_w'], p['sa_b'] = lin(keys[2], 3 * d, d)           # self-attn in_proj
    p['sa_ow'], p['sa_ob'] = lin(keys[3], d, d)             # self-attn out_proj
    p['ca_w'], p['ca_b'] = lin(keys[4], 3 * d, d)           # cross-attn in_proj
    p['ca_ow'], p['ca_ob'] = lin(keys[5], d, d)             # cross-attn out_proj
    p['ff_w1'], p['ff_b1'] = lin(keys[6], dff, d)           # Linear(32, 64)
    p['ff_w2'], p['ff_b2'] = lin(keys[7], d, dff)           # Linear(64, 32)
    p['n1_g'], p['n1_b'] = ln_init(keys[8])
    p['n2_g'], p['n2_b'] = ln_init(keys[9])
    p['n3_g'], p['n3_b'] = ln_init(keys[10])
    p['nf_g'], p['nf_b'] = ln_init(keys[11])                # TransformerDecoder final norm
    p['out_w'], p['out_b'] = lin(keys[12], 1, d)            # output_layer Linear(32, 1)
    emb = 0.1 * jax.random.normal(keys[13], (nc + 1, d4), jnp.float32)
    p['event_emb'] = emb.at[nc].set(0.0)                    # padding_idx = num_classes
    p['position_vec'] = jnp.array([10000.0 ** (2.0 * (i // 2) / d4) for i in range(d4)], jnp.float32)
    p['order_vec'] = jnp.array([10000.0 ** (2.0 * (i // 2) / d) for i in range(d)], jnp.float32)
    return p


# ----------------------------- main -----------------------------
if __name__ == "__main__":
    key = jax.random.PRNGKey(0)
    k1, k2, k3, k4, kp = jax.random.split(key, 5)

    B, L, Lc = 2, 8, 8
    x = jax.random.uniform(k1, (B, L), jnp.float32, 0.1, 2.0)            # inter-event times
    e = jax.random.randint(k2, (B, L), 0, NUM_CLASSES + 1)               # event types (incl. pad)
    t = jax.random.uniform(k3, (B,), jnp.float32)                        # diffusion step
    hist = jax.random.normal(k4, (B, Lc, TRANSFORMER_DIM), jnp.float32)  # history representation
    non_padding_mask = jnp.zeros((B, Lc), jnp.float32)                   # additive key-pad mask

    params = init_params(kp)

    fwd = jax.jit(time_denoising_forward)
    out = jax.block_until_ready(fwd(x, e, t, hist, non_padding_mask, params))
    assert out.shape == (B, L, 1), out.shape

    ref = jax.block_until_ready(reference_forward(x, e, t, hist, non_padding_mask, params))
    err = float(jnp.max(jnp.abs(out - ref)))
    assert jnp.allclose(out, ref, atol=1e-2, rtol=1e-2), f"max abs err {err}"

    print("KERNEL_OK")
</pallas_src>

<mosaic_0001>
module attributes {stable_mosaic.version = 11 : i64} {
  func.func @_decoder_kernel(%arg0: i32, %arg1: memref<1x16x32xf32, #tpu.memory_space<vmem>>, %arg2: memref<1x16x32xf32, #tpu.memory_space<vmem>>, %arg3: memref<16x16xf32, #tpu.memory_space<vmem>>, %arg4: memref<1x16x16xf32, #tpu.memory_space<vmem>>, %arg5: memref<7x64x128xf32, #tpu.memory_space<vmem>>, %arg6: memref<16x128xf32, #tpu.memory_space<vmem>>, %arg7: memref<1x16x32xf32, #tpu.memory_space<vmem>>) attributes {dimension_semantics = [#tpu.dimension_semantics<parallel>], iteration_bounds = array<i64: 1>, scalar_prefetch = 0 : i64, scratch_operands = 0 : i64, tpu.core_type = #tpu.core_type<tc>, window_params = [{transform_indices = @transform_0, window_bounds = array<i64: 1, 16, 32>}, {transform_indices = @transform_1, window_bounds = array<i64: 1, 16, 32>}, {pipeline_mode = #tpu.pipeline_mode<synchronous>, transform_indices = @transform_2, window_bounds = array<i64: 16, 16>}, {transform_indices = @transform_3, window_bounds = array<i64: 1, 16, 16>}, {pipeline_mode = #tpu.pipeline_mode<synchronous>, transform_indices = @transform_4, window_bounds = array<i64: 7, 64, 128>}, {pipeline_mode = #tpu.pipeline_mode<synchronous>, transform_indices = @transform_5, window_bounds = array<i64: 16, 128>}, {transform_indices = @transform_6, window_bounds = array<i64: 1, 16, 32>}]} {
    %c0 = arith.constant 0 : index
    %c0_0 = arith.constant 0 : index
    %c0_1 = arith.constant 0 : index
    %0 = vector.load %arg1[%c0, %c0_0, %c0_1] : memref<1x16x32xf32, #tpu.memory_space<vmem>>, vector<1x16x32xf32>
    %1 = vector.shape_cast %0 : vector<1x16x32xf32> to vector<16x32xf32>
    %c0_2 = arith.constant 0 : index
    %c0_3 = arith.constant 0 : index
    %c0_4 = arith.constant 0 : index
    %2 = vector.load %arg2[%c0_2, %c0_3, %c0_4] : memref<1x16x32xf32, #tpu.memory_space<vmem>>, vector<1x16x32xf32>
    %3 = vector.shape_cast %2 : vector<1x16x32xf32> to vector<16x32xf32>
    %c0_5 = arith.constant 0 : index
    %c0_6 = arith.constant 0 : index
    %4 = vector.load %arg3[%c0_5, %c0_6] : memref<16x16xf32, #tpu.memory_space<vmem>>, vector<16x16xf32>
    %c0_7 = arith.constant 0 : index
    %c0_8 = arith.constant 0 : index
    %c0_9 = arith.constant 0 : index
    %5 = vector.load %arg4[%c0_7, %c0_8, %c0_9] : memref<1x16x16xf32, #tpu.memory_space<vmem>>, vector<1x16x16xf32>
    %6 = vector.shape_cast %5 : vector<1x16x16xf32> to vector<16x16xf32>
    %c0_10 = arith.constant 0 : index
    %c0_11 = arith.constant 0 : index
    %7 = vector.load %arg6[%c0_10, %c0_11] : memref<16x128xf32, #tpu.memory_space<vmem>>, vector<16x128xf32>
    %c0_12 = arith.constant 0 : index
    %c0_13 = arith.constant 0 : index
    %c0_14 = arith.constant 0 : index
    %8 = vector.load %arg5[%c0_12, %c0_13, %c0_14] : memref<7x64x128xf32, #tpu.memory_space<vmem>>, vector<1x64x128xf32>
    %9 = vector.shape_cast %8 : vector<1x64x128xf32> to vector<64x128xf32>
    %10 = vector.extract_strided_slice %9 {offsets = [0, 0], sizes = [32, 96], strides = [1, 1]} : vector<64x128xf32> to vector<32x96xf32>
    %cst = arith.constant dense<0.000000e+00> : vector<16x96xf32>
    %11 = tpu.matmul %1, %10, %cst {dimension_numbers = #tpu.dot_dimension_numbers<[1], [0], [0], [1], [0, 0, 1, 1], [], []>} : vector<16x32xf32>, vector<32x96xf32>, vector<16x96xf32> -> vector<16x96xf32>
    %12 = vector.extract_strided_slice %7 {offsets = [0, 0], sizes = [1, 96], strides = [1, 1]} : vector<16x128xf32> to vector<1x96xf32>
    %13 = vector.broadcast %12 : vector<1x96xf32> to vector<16x96xf32>
    %14 = arith.addf %11, %13 : vector<16x96xf32>
    %15 = vector.extract_strided_slice %14 {offsets = [0, 0], sizes = [16, 16], strides = [1, 1]} : vector<16x96xf32> to vector<16x16xf32>
    %16 = vector.extract_strided_slice %14 {offsets = [0, 32], sizes = [16, 16], strides = [1, 1]} : vector<16x96xf32> to vector<16x16xf32>
    %17 = vector.extract_strided_slice %14 {offsets = [0, 64], sizes = [16, 16], strides = [1, 1]} : vector<16x96xf32> to vector<16x16xf32>
    %18 = tpu.transpose %16, [1, 0] : vector<16x16xf32> -> vector<16x16xf32>
    %cst_15 = arith.constant dense<0.000000e+00> : vector<16x16xf32>
    %19 = tpu.matmul %15, %18, %cst_15 {dimension_numbers = #tpu.dot_dimension_numbers<[1], [0], [0], [1], [0, 0, 1, 1], [], []>} : vector<16x16xf32>, vector<16x16xf32>, vector<16x16xf32> -> vector<16x16xf32>
    %cst_16 = arith.constant 2.500000e-01 : f32
    %20 = vector.broadcast %cst_16 : f32 to vector<16x16xf32>
    %21 = arith.mulf %19, %20 : vector<16x16xf32>
    %22 = arith.addf %21, %4 : vector<16x16xf32>
    %cst_17 = arith.constant dense<0xFF800000> : vector<16xf32>
    %23 = vector.multi_reduction <maximumf>, %22, %cst_17 [1] : vector<16x16xf32> to vector<16xf32>
    %24 = vector.shape_cast %23 : vector<16xf32> to vector<16x1xf32>
    %25 = vector.broadcast %24 : vector<16x1xf32> to vector<16x16xf32>
    %26 = arith.subf %22, %25 : vector<16x16xf32>
    %27 = math.exp %26 : vector<16x16xf32>
    %cst_18 = arith.constant dense<0.000000e+00> : vector<16xf32>
    %28 = vector.multi_reduction <add>, %27, %cst_18 [1] : vector<16x16xf32> to vector<16xf32>
    %29 = vector.shape_cast %28 : vector<16xf32> to vector<16x1xf32>
    %30 = vector.broadcast %29 : vector<16x1xf32> to vector<16x16xf32>
    %31 = arith.divf %27, %30 : vector<16x16xf32>
    %cst_19 = arith.constant dense<0.000000e+00> : vector<16x16xf32>
    %32 = tpu.matmul %31, %17, %cst_19 {dimension_numbers = #tpu.dot_dimension_numbers<[1], [0], [0], [1], [0, 0, 1, 1], [], []>} : vector<16x16xf32>, vector<16x16xf32>, vector<16x16xf32> -> vector<16x16xf32>
    %33 = vector.extract_strided_slice %14 {offsets = [0, 16], sizes = [16, 16], strides = [1, 1]} : vector<16x96xf32> to vector<16x16xf32>
    %34 = vector.extract_strided_slice %14 {offsets = [0, 48], sizes = [16, 16], strides = [1, 1]} : vector<16x96xf32> to vector<16x16xf32>
    %35 = vector.extract_strided_slice %14 {offsets = [0, 80], sizes = [16, 16], strides = [1, 1]} : vector<16x96xf32> to vector<16x16xf32>
    %36 = tpu.transpose %34, [1, 0] : vector<16x16xf32> -> vector<16x16xf32>
    %cst_20 = arith.constant dense<0.000000e+00> : vector<16x16xf32>
    %37 = tpu.matmul %33, %36, %cst_20 {dimension_numbers = #tpu.dot_dimension_numbers<[1], [0], [0], [1], [0, 0, 1, 1], [], []>} : vector<16x16xf32>, vector<16x16xf32>, vector<16x16xf32> -> vector<16x16xf32>
    %cst_21 = arith.constant 2.500000e-01 : f32
    %38 = vector.broadcast %cst_21 : f32 to vector<16x16xf32>
    %39 = arith.mulf %37, %38 : vector<16x16xf32>
    %40 = arith.addf %39, %4 : vector<16x16xf32>
    %cst_22 = arith.constant dense<0xFF800000> : vector<16xf32>
    %41 = vector.multi_reduction <maximumf>, %40, %cst_22 [1] : vector<16x16xf32> to vector<16xf32>
    %42 = vector.shape_cast %41 : vector<16xf32> to vector<16x1xf32>
    %43 = vector.broadcast %42 : vector<16x1xf32> to vector<16x16xf32>
    %44 = arith.subf %40, %43 : vector<16x16xf32>
    %45 = math.exp %44 : vector<16x16xf32>
    %cst_23 = arith.constant dense<0.000000e+00> : vector<16xf32>
    %46 = vector.multi_reduction <add>, %45, %cst_23 [1] : vector<16x16xf32> to vector<16xf32>
    %47 = vector.shape_cast %46 : vector<16xf32> to vector<16x1xf32>
    %48 = vector.broadcast %47 : vector<16x1xf32> to vector<16x16xf32>
    %49 = arith.divf %45, %48 : vector<16x16xf32>
    %cst_24 = arith.constant dense<0.000000e+00> : vector<16x16xf32>
    %50 = tpu.matmul %49, %35, %cst_24 {dimension_numbers = #tpu.dot_dimension_numbers<[1], [0], [0], [1], [0, 0, 1, 1], [], []>} : vector<16x16xf32>, vector<16x16xf32>, vector<16x16xf32> -> vector<16x16xf32>
    %51 = tpu.concatenate %32, %50 in 1 : vector<16x16xf32>, vector<16x16xf32> -> vector<16x32xf32>
    %c1 = arith.constant 1 : index
    %c0_25 = arith.constant 0 : index
    %c0_26 = arith.constant 0 : index
    %52 = vector.load %arg5[%c1, %c0_25, %c0_26] : memref<7x64x128xf32, #tpu.memory_space<vmem>>, vector<1x64x128xf32>
    %53 = vector.shape_cast %52 : vector<1x64x128xf32> to vector<64x128xf32>
    %54 = vector.extract_strided_slice %53 {offsets = [0, 0], sizes = [32, 32], strides = [1, 1]} : vector<64x128xf32> to vector<32x32xf32>
    %cst_27 = arith.constant dense<0.000000e+00> : vector<16x32xf32>
    %55 = tpu.matmul %51, %54, %cst_27 {dimension_numbers = #tpu.dot_dimension_numbers<[1], [0], [0], [1], [0, 0, 1, 1], [], []>} : vector<16x32xf32>, vector<32x32xf32>, vector<16x32xf32> -> vector<16x32xf32>
    %56 = vector.extract_strided_slice %7 {offsets = [1, 0], sizes = [1, 32], strides = [1, 1]} : vector<16x128xf32> to vector<1x32xf32>
    %57 = vector.broadcast %56 : vector<1x32xf32> to vector<16x32xf32>
    %58 = arith.addf %55, %57 : vector<16x32xf32>
    %59 = arith.addf %1, %58 : vector<16x32xf32>
    %cst_28 = arith.constant dense<0.000000e+00> : vector<16xf32>
    %60 = vector.multi_reduction <add>, %59, %cst_28 [1] : vector<16x32xf32> to vector<16xf32>
    %61 = vector.shape_cast %60 : vector<16xf32> to vector<16x1xf32>
    %cst_29 = arith.constant 3.200000e+01 : f32
    %62 = vector.broadcast %cst_29 : f32 to vector<16x1xf32>
    %63 = arith.divf %61, %62 : vector<16x1xf32>
    %64 = vector.broadcast %63 : vector<16x1xf32> to vector<16x32xf32>
    %65 = arith.subf %59, %64 : vector<16x32xf32>
    %66 = arith.mulf %65, %65 : vector<16x32xf32>
    %cst_30 = arith.constant dense<0.000000e+00> : vector<16xf32>
    %67 = vector.multi_reduction <add>, %66, %cst_30 [1] : vector<16x32xf32> to vector<16xf32>
    %68 = vector.shape_cast %67 : vector<16xf32> to vector<16x1xf32>
    %cst_31 = arith.constant 3.200000e+01 : f32
    %69 = vector.broadcast %cst_31 : f32 to vector<16x1xf32>
    %70 = arith.divf %68, %69 : vector<16x1xf32>
    %71 = vector.broadcast %63 : vector<16x1xf32> to vector<16x32xf32>
    %72 = arith.subf %59, %71 : vector<16x32xf32>
    %cst_32 = arith.constant 9.99999974E-6 : f32
    %73 = vector.broadcast %cst_32 : f32 to vector<16x1xf32>
    %74 = arith.addf %70, %73 : vector<16x1xf32>
    %75 = math.rsqrt %74 : vector<16x1xf32>
    %76 = vector.broadcast %75 : vector<16x1xf32> to vector<16x32xf32>
    %77 = arith.mulf %72, %76 : vector<16x32xf32>
    %78 = vector.extract_strided_slice %7 {offsets = [7, 0], sizes = [1, 32], strides = [1, 1]} : vector<16x128xf32> to vector<1x32xf32>
    %79 = vector.broadcast %78 : vector<1x32xf32> to vector<16x32xf32>
    %80 = arith.mulf %77, %79 : vector<16x32xf32>
    %81 = vector.extract_strided_slice %7 {offsets = [8, 0], sizes = [1, 32], strides = [1, 1]} : vector<16x128xf32> to vector<1x32xf32>
    %82 = vector.broadcast %81 : vector<1x32xf32> to vector<16x32xf32>
    %83 = arith.addf %80, %82 : vector<16x32xf32>
    %c2 = arith.constant 2 : index
    %c0_33 = arith.constant 0 : index
    %c0_34 = arith.constant 0 : index
    %84 = vector.load %arg5[%c2, %c0_33, %c0_34] : memref<7x64x128xf32, #tpu.memory_space<vmem>>, vector<1x64x128xf32>
    %85 = vector.shape_cast %84 : vector<1x64x128xf32> to vector<64x128xf32>
    %86 = vector.extract_strided_slice %85 {offsets = [0, 0], sizes = [32, 32], strides = [1, 1]} : vector<64x128xf32> to vector<32x32xf32>
    %cst_35 = arith.constant dense<0.000000e+00> : vector<16x32xf32>
    %87 = tpu.matmul %83, %86, %cst_35 {dimension_numbers = #tpu.dot_dimension_numbers<[1], [0], [0], [1], [0, 0, 1, 1], [], []>} : vector<16x32xf32>, vector<32x32xf32>, vector<16x32xf32> -> vector<16x32xf32>
    %88 = vector.extract_strided_slice %7 {offsets = [2, 0], sizes = [1, 32], strides = [1, 1]} : vector<16x128xf32> to vector<1x32xf32>
    %89 = vector.broadcast %88 : vector<1x32xf32> to vector<16x32xf32>
    %90 = arith.addf %87, %89 : vector<16x32xf32>
    %c3 = arith.constant 3 : index
    %c0_36 = arith.constant 0 : index
    %c0_37 = arith.constant 0 : index
    %91 = vector.load %arg5[%c3, %c0_36, %c0_37] : memref<7x64x128xf32, #tpu.memory_space<vmem>>, vector<1x64x128xf32>
    %92 = vector.shape_cast %91 : vector<1x64x128xf32> to vector<64x128xf32>
    %93 = vector.extract_strided_slice %92 {offsets = [0, 0], sizes = [32, 64], strides = [1, 1]} : vector<64x128xf32> to vector<32x64xf32>
    %cst_38 = arith.constant dense<0.000000e+00> : vector<16x64xf32>
    %94 = tpu.matmul %3, %93, %cst_38 {dimension_numbers = #tpu.dot_dimension_numbers<[1], [0], [0], [1], [0, 0, 1, 1], [], []>} : vector<16x32xf32>, vector<32x64xf32>, vector<16x64xf32> -> vector<16x64xf32>
    %95 = vector.extract_strided_slice %7 {offsets = [3, 0], sizes = [1, 64], strides = [1, 1]} : vector<16x128xf32> to vector<1x64xf32>
    %96 = vector.broadcast %95 : vector<1x64xf32> to vector<16x64xf32>
    %97 = arith.addf %94, %96 : vector<16x64xf32>
    %98 = vector.extract_strided_slice %90 {offsets = [0, 0], sizes = [16, 16], strides = [1, 1]} : vector<16x32xf32> to vector<16x16xf32>
    %99 = vector.extract_strided_slice %97 {offsets = [0, 0], sizes = [16, 16], strides = [1, 1]} : vector<16x64xf32> to vector<16x16xf32>
    %100 = vector.extract_strided_slice %97 {offsets = [0, 32], sizes = [16, 16], strides = [1, 1]} : vector<16x64xf32> to vector<16x16xf32>
    %101 = tpu.transpose %99, [1, 0] : vector<16x16xf32> -> vector<16x16xf32>
    %cst_39 = arith.constant dense<0.000000e+00> : vector<16x16xf32>
    %102 = tpu.matmul %98, %101, %cst_39 {dimension_numbers = #tpu.dot_dimension_numbers<[1], [0], [0], [1], [0, 0, 1, 1], [], []>} : vector<16x16xf32>, vector<16x16xf32>, vector<16x16xf32> -> vector<16x16xf32>
    %cst_40 = arith.constant 2.500000e-01 : f32
    %103 = vector.broadcast %cst_40 : f32 to vector<16x16xf32>
    %104 = arith.mulf %102, %103 : vector<16x16xf32>
    %105 = arith.addf %104, %6 : vector<16x16xf32>
    %cst_41 = arith.constant dense<0xFF800000> : vector<16xf32>
    %106 = vector.multi_reduction <maximumf>, %105, %cst_41 [1] : vector<16x16xf32> to vector<16xf32>
    %107 = vector.shape_cast %106 : vector<16xf32> to vector<16x1xf32>
    %108 = vector.broadcast %107 : vector<16x1xf32> to vector<16x16xf32>
    %109 = arith.subf %105, %108 : vector<16x16xf32>
    %110 = math.exp %109 : vector<16x16xf32>
    %cst_42 = arith.constant dense<0.000000e+00> : vector<16xf32>
    %111 = vector.multi_reduction <add>, %110, %cst_42 [1] : vector<16x16xf32> to vector<16xf32>
    %112 = vector.shape_cast %111 : vector<16xf32> to vector<16x1xf32>
    %113 = vector.broadcast %112 : vector<16x1xf32> to vector<16x16xf32>
    %114 = arith.divf %110, %113 : vector<16x16xf32>
    %cst_43 = arith.constant dense<0.000000e+00> : vector<16x16xf32>
    %115 = tpu.matmul %114, %100, %cst_43 {dimension_numbers = #tpu.dot_dimension_numbers<[1], [0], [0], [1], [0, 0, 1, 1], [], []>} : vector<16x16xf32>, vector<16x16xf32>, vector<16x16xf32> -> vector<16x16xf32>
    %116 = vector.extract_strided_slice %90 {offsets = [0, 16], sizes = [16, 16], strides = [1, 1]} : vector<16x32xf32> to vector<16x16xf32>
    %117 = vector.extract_strided_slice %97 {offsets = [0, 16], sizes = [16, 16], strides = [1, 1]} : vector<16x64xf32> to vector<16x16xf32>
    %118 = vector.extract_strided_slice %97 {offsets = [0, 48], sizes = [16, 16], strides = [1, 1]} : vector<16x64xf32> to vector<16x16xf32>
    %119 = tpu.transpose %117, [1, 0] : vector<16x16xf32> -> vector<16x16xf32>
    %cst_44 = arith.constant dense<0.000000e+00> : vector<16x16xf32>
    %120 = tpu.matmul %116, %119, %cst_44 {dimension_numbers = #tpu.dot_dimension_numbers<[1], [0], [0], [1], [0, 0, 1, 1], [], []>} : vector<16x16xf32>, vector<16x16xf32>, vector<16x16xf32> -> vector<16x16xf32>
    %cst_45 = arith.constant 2.500000e-01 : f32
    %121 = vector.broadcast %cst_45 : f32 to vector<16x16xf32>
    %122 = arith.mulf %120, %121 : vector<16x16xf32>
    %123 = arith.addf %122, %6 : vector<16x16xf32>
    %cst_46 = arith.constant dense<0xFF800000> : vector<16xf32>
    %124 = vector.multi_reduction <maximumf>, %123, %cst_46 [1] : vector<16x16xf32> to vector<16xf32>
    %125 = vector.shape_cast %124 : vector<16xf32> to vector<16x1xf32>
    %126 = vector.broadcast %125 : vector<16x1xf32> to vector<16x16xf32>
    %127 = arith.subf %123, %126 : vector<16x16xf32>
    %128 = math.exp %127 : vector<16x16xf32>
    %cst_47 = arith.constant dense<0.000000e+00> : vector<16xf32>
    %129 = vector.multi_reduction <add>, %128, %cst_47 [1] : vector<16x16xf32> to vector<16xf32>
    %130 = vector.shape_cast %129 : vector<16xf32> to vector<16x1xf32>
    %131 = vector.broadcast %130 : vector<16x1xf32> to vector<16x16xf32>
    %132 = arith.divf %128, %131 : vector<16x16xf32>
    %cst_48 = arith.constant dense<0.000000e+00> : vector<16x16xf32>
    %133 = tpu.matmul %132, %118, %cst_48 {dimension_numbers = #tpu.dot_dimension_numbers<[1], [0], [0], [1], [0, 0, 1, 1], [], []>} : vector<16x16xf32>, vector<16x16xf32>, vector<16x16xf32> -> vector<16x16xf32>
    %134 = tpu.concatenate %115, %133 in 1 : vector<16x16xf32>, vector<16x16xf32> -> vector<16x32xf32>
    %c4 = arith.constant 4 : index
    %c0_49 = arith.constant 0 : index
    %c0_50 = arith.constant 0 : index
    %135 = vector.load %arg5[%c4, %c0_49, %c0_50] : memref<7x64x128xf32, #tpu.memory_space<vmem>>, vector<1x64x128xf32>
    %136 = vector.shape_cast %135 : vector<1x64x128xf32> to vector<64x128xf32>
    %137 = vector.extract_strided_slice %136 {offsets = [0, 0], sizes = [32, 32], strides = [1, 1]} : vector<64x128xf32> to vector<32x32xf32>
    %cst_51 = arith.constant dense<0.000000e+00> : vector<16x32xf32>
    %138 = tpu.matmul %134, %137, %cst_51 {dimension_numbers = #tpu.dot_dimension_numbers<[1], [0], [0], [1], [0, 0, 1, 1], [], []>} : vector<16x32xf32>, vector<32x32xf32>, vector<16x32xf32> -> vector<16x32xf32>
    %139 = vector.extract_strided_slice %7 {offsets = [4, 0], sizes = [1, 32], strides = [1, 1]} : vector<16x128xf32> to vector<1x32xf32>
    %140 = vector.broadcast %139 : vector<1x32xf32> to vector<16x32xf32>
    %141 = arith.addf %138, %140 : vector<16x32xf32>
    %142 = arith.addf %83, %141 : vector<16x32xf32>
    %cst_52 = arith.constant dense<0.000000e+00> : vector<16xf32>
    %143 = vector.multi_reduction <add>, %142, %cst_52 [1] : vector<16x32xf32> to vector<16xf32>
    %144 = vector.shape_cast %143 : vector<16xf32> to vector<16x1xf32>
    %cst_53 = arith.constant 3.200000e+01 : f32
    %145 = vector.broadcast %cst_53 : f32 to vector<16x1xf32>
    %146 = arith.divf %144, %145 : vector<16x1xf32>
    %147 = vector.broadcast %146 : vector<16x1xf32> to vector<16x32xf32>
    %148 = arith.subf %142, %147 : vector<16x32xf32>
    %149 = arith.mulf %148, %148 : vector<16x32xf32>
    %cst_54 = arith.constant dense<0.000000e+00> : vector<16xf32>
    %150 = vector.multi_reduction <add>, %149, %cst_54 [1] : vector<16x32xf32> to vector<16xf32>
    %151 = vector.shape_cast %150 : vector<16xf32> to vector<16x1xf32>
    %cst_55 = arith.constant 3.200000e+01 : f32
    %152 = vector.broadcast %cst_55 : f32 to vector<16x1xf32>
    %153 = arith.divf %151, %152 : vector<16x1xf32>
    %154 = vector.broadcast %146 : vector<16x1xf32> to vector<16x32xf32>
    %155 = arith.subf %142, %154 : vector<16x32xf32>
    %cst_56 = arith.constant 9.99999974E-6 : f32
    %156 = vector.broadcast %cst_56 : f32 to vector<16x1xf32>
    %157 = arith.addf %153, %156 : vector<16x1xf32>
    %158 = math.rsqrt %157 : vector<16x1xf32>
    %159 = vector.broadcast %158 : vector<16x1xf32> to vector<16x32xf32>
    %160 = arith.mulf %155, %159 : vector<16x32xf32>
    %161 = vector.extract_strided_slice %7 {offsets = [9, 0], sizes = [1, 32], strides = [1, 1]} : vector<16x128xf32> to vector<1x32xf32>
    %162 = vector.broadcast %161 : vector<1x32xf32> to vector<16x32xf32>
    %163 = arith.mulf %160, %162 : vector<16x32xf32>
    %164 = vector.extract_strided_slice %7 {offsets = [10, 0], sizes = [1, 32], strides = [1, 1]} : vector<16x128xf32> to vector<1x32xf32>
    %165 = vector.broadcast %164 : vector<1x32xf32> to vector<16x32xf32>
    %166 = arith.addf %163, %165 : vector<16x32xf32>
    %c5 = arith.constant 5 : index
    %c0_57 = arith.constant 0 : index
    %c0_58 = arith.constant 0 : index
    %167 = vector.load %arg5[%c5, %c0_57, %c0_58] : memref<7x64x128xf32, #tpu.memory_space<vmem>>, vector<1x64x128xf32>
    %168 = vector.shape_cast %167 : vector<1x64x128xf32> to vector<64x128xf32>
    %169 = vector.extract_strided_slice %168 {offsets = [0, 0], sizes = [32, 64], strides = [1, 1]} : vector<64x128xf32> to vector<32x64xf32>
    %cst_59 = arith.constant dense<0.000000e+00> : vector<16x64xf32>
    %170 = tpu.matmul %166, %169, %cst_59 {dimension_numbers = #tpu.dot_dimension_numbers<[1], [0], [0], [1], [0, 0, 1, 1], [], []>} : vector<16x32xf32>, vector<32x64xf32>, vector<16x64xf32> -> vector<16x64xf32>
    %171 = vector.extract_strided_slice %7 {offsets = [5, 0], sizes = [1, 64], strides = [1, 1]} : vector<16x128xf32> to vector<1x64xf32>
    %172 = vector.broadcast %171 : vector<1x64xf32> to vector<16x64xf32>
    %173 = arith.addf %170, %172 : vector<16x64xf32>
    %cst_60 = arith.constant 0.000000e+00 : f32
    %174 = vector.broadcast %cst_60 : f32 to vector<16x64xf32>
    %175 = arith.maximumf %173, %174 : vector<16x64xf32>
    %c6 = arith.constant 6 : index
    %c0_61 = arith.constant 0 : index
    %c0_62 = arith.constant 0 : index
    %176 = vector.load %arg5[%c6, %c0_61, %c0_62] : memref<7x64x128xf32, #tpu.memory_space<vmem>>, vector<1x64x128xf32>
    %177 = vector.shape_cast %176 : vector<1x64x128xf32> to vector<64x128xf32>
    %178 = vector.extract_strided_slice %177 {offsets = [0, 0], sizes = [64, 32], strides = [1, 1]} : vector<64x128xf32> to vector<64x32xf32>
    %cst_63 = arith.constant dense<0.000000e+00> : vector<16x32xf32>
    %179 = tpu.matmul %175, %178, %cst_63 {dimension_numbers = #tpu.dot_dimension_numbers<[1], [0], [0], [1], [0, 0, 1, 1], [], []>} : vector<16x64xf32>, vector<64x32xf32>, vector<16x32xf32> -> vector<16x32xf32>
    %180 = vector.extract_strided_slice %7 {offsets = [6, 0], sizes = [1, 32], strides = [1, 1]} : vector<16x128xf32> to vector<1x32xf32>
    %181 = vector.broadcast %180 : vector<1x32xf32> to vector<16x32xf32>
    %182 = arith.addf %179, %181 : vector<16x32xf32>
    %183 = arith.addf %166, %182 : vector<16x32xf32>
    %cst_64 = arith.constant dense<0.000000e+00> : vector<16xf32>
    %184 = vector.multi_reduction <add>, %183, %cst_64 [1] : vector<16x32xf32> to vector<16xf32>
    %185 = vector.shape_cast %184 : vector<16xf32> to vector<16x1xf32>
    %cst_65 = arith.constant 3.200000e+01 : f32
    %186 = vector.broadcast %cst_65 : f32 to vector<16x1xf32>
    %187 = arith.divf %185, %186 : vector<16x1xf32>
    %188 = vector.broadcast %187 : vector<16x1xf32> to vector<16x32xf32>
    %189 = arith.subf %183, %188 : vector<16x32xf32>
    %190 = arith.mulf %189, %189 : vector<16x32xf32>
    %cst_66 = arith.constant dense<0.000000e+00> : vector<16xf32>
    %191 = vector.multi_reduction <add>, %190, %cst_66 [1] : vector<16x32xf32> to vector<16xf32>
    %192 = vector.shape_cast %191 : vector<16xf32> to vector<16x1xf32>
    %cst_67 = arith.constant 3.200000e+01 : f32
    %193 = vector.broadcast %cst_67 : f32 to vector<16x1xf32>
    %194 = arith.divf %192, %193 : vector<16x1xf32>
    %195 = vector.broadcast %187 : vector<16x1xf32> to vector<16x32xf32>
    %196 = arith.subf %183, %195 : vector<16x32xf32>
    %cst_68 = arith.constant 9.99999974E-6 : f32
    %197 = vector.broadcast %cst_68 : f32 to vector<16x1xf32>
    %198 = arith.addf %194, %197 : vector<16x1xf32>
    %199 = math.rsqrt %198 : vector<16x1xf32>
    %200 = vector.broadcast %199 : vector<16x1xf32> to vector<16x32xf32>
    %201 = arith.mulf %196, %200 : vector<16x32xf32>
    %202 = vector.extract_strided_slice %7 {offsets = [11, 0], sizes = [1, 32], strides = [1, 1]} : vector<16x128xf32> to vector<1x32xf32>
    %203 = vector.broadcast %202 : vector<1x32xf32> to vector<16x32xf32>
    %204 = arith.mulf %201, %203 : vector<16x32xf32>
    %205 = vector.extract_strided_slice %7 {offsets = [12, 0], sizes = [1, 32], strides = [1, 1]} : vector<16x128xf32> to vector<1x32xf32>
    %206 = vector.broadcast %205 : vector<1x32xf32> to vector<16x32xf32>
    %207 = arith.addf %204, %206 : vector<16x32xf32>
    %cst_69 = arith.constant dense<0.000000e+00> : vector<16xf32>
    %208 = vector.multi_reduction <add>, %207, %cst_69 [1] : vector<16x32xf32> to vector<16xf32>
    %209 = vector.shape_cast %208 : vector<16xf32> to vector<16x1xf32>
    %cst_70 = arith.constant 3.200000e+01 : f32
    %210 = vector.broadcast %cst_70 : f32 to vector<16x1xf32>
    %211 = arith.divf %209, %210 : vector<16x1xf32>
    %212 = vector.broadcast %211 : vector<16x1xf32> to vector<16x32xf32>
    %213 = arith.subf %207, %212 : vector<16x32xf32>
    %214 = arith.mulf %213, %213 : vector<16x32xf32>
    %cst_71 = arith.constant dense<0.000000e+00> : vector<16xf32>
    %215 = vector.multi_reduction <add>, %214, %cst_71 [1] : vector<16x32xf32> to vector<16xf32>
    %216 = vector.shape_cast %215 : vector<16xf32> to vector<16x1xf32>
    %cst_72 = arith.constant 3.200000e+01 : f32
    %217 = vector.broadcast %cst_72 : f32 to vector<16x1xf32>
    %218 = arith.divf %216, %217 : vector<16x1xf32>
    %219 = vector.broadcast %211 : vector<16x1xf32> to vector<16x32xf32>
    %220 = arith.subf %207, %219 : vector<16x32xf32>
    %cst_73 = arith.constant 9.99999974E-6 : f32
    %221 = vector.broadcast %cst_73 : f32 to vector<16x1xf32>
    %222 = arith.addf %218, %221 : vector<16x1xf32>
    %223 = math.rsqrt %222 : vector<16x1xf32>
    %224 = vector.broadcast %223 : vector<16x1xf32> to vector<16x32xf32>
    %225 = arith.mulf %220, %224 : vector<16x32xf32>
    %226 = vector.extract_strided_slice %7 {offsets = [13, 0], sizes = [1, 32], strides = [1, 1]} : vector<16x128xf32> to vector<1x32xf32>
    %227 = vector.broadcast %226 : vector<1x32xf32> to vector<16x32xf32>
    %228 = arith.mulf %225, %227 : vector<16x32xf32>
    %229 = vector.extract_strided_slice %7 {offsets = [14, 0], sizes = [1, 32], strides = [1, 1]} : vector<16x128xf32> to vector<1x32xf32>
    %230 = vector.broadcast %229 : vector<1x32xf32> to vector<16x32xf32>
    %231 = arith.addf %228, %230 : vector<16x32xf32>
    %c0_74 = arith.constant 0 : index
    %c0_75 = arith.constant 0 : index
    %c0_76 = arith.constant 0 : index
    %232 = vector.load %arg7[%c0_74, %c0_75, %c0_76] : memref<1x16x32xf32, #tpu.memory_space<vmem>>, vector<1x16x32xf32>
    %233 = vector.shape_cast %232 : vector<1x16x32xf32> to vector<16x32xf32>
    %234 = vector.shape_cast %231 : vector<16x32xf32> to vector<1x16x32xf32>
    tpu.vector_store %arg7[%c0_74, %c0_75, %c0_76], %234 {strides = array<i32>} : memref<1x16x32xf32, #tpu.memory_space<vmem>>, vector<1x16x32xf32>,
    return
  }
  func.func @transform_0(%arg0: i32) -> (i32, i32, i32) {
    %c0_i32 = arith.constant 0 : i32
    %c0_i32_0 = arith.constant 0 : i32
    %c0_i32_1 = arith.constant 0 : i32
    return %arg0, %c0_i32, %c0_i32_0 : i32, i32, i32
  }
  func.func @transform_1(%arg0: i32) -> (i32, i32, i32) {
    %c0_i32 = arith.constant 0 : i32
    %c0_i32_0 = arith.constant 0 : i32
    %c0_i32_1 = arith.constant 0 : i32
    return %arg0, %c0_i32, %c0_i32_0 : i32, i32, i32
  }
  func.func @transform_2(%arg0: i32) -> (i32, i32) {
    %c0_i32 = arith.constant 0 : i32
    %c0_i32_0 = arith.constant 0 : i32
    %c0_i32_1 = arith.constant 0 : i32
    return %c0_i32, %c0_i32_0 : i32, i32
  }
  func.func @transform_3(%arg0: i32) -> (i32, i32, i32) {
    %c0_i32 = arith.constant 0 : i32
    %c0_i32_0 = arith.constant 0 : i32
    %c0_i32_1 = arith.constant 0 : i32
    return %arg0, %c0_i32, %c0_i32_0 : i32, i32, i32
  }
  func.func @transform_4(%arg0: i32) -> (i32, i32, i32) {
    %c0_i32 = arith.constant 0 : i32
    %c0_i32_0 = arith.constant 0 : i32
    %c0_i32_1 = arith.constant 0 : i32
    %c0_i32_2 = arith.constant 0 : i32
    return %c0_i32, %c0_i32_0, %c0_i32_1 : i32, i32, i32
  }
  func.func @transform_5(%arg0: i32) -> (i32, i32) {
    %c0_i32 = arith.constant 0 : i32
    %c0_i32_0 = arith.constant 0 : i32
    %c0_i32_1 = arith.constant 0 : i32
    return %c0_i32, %c0_i32_0 : i32, i32
  }
  func.func @transform_6(%arg0: i32) -> (i32, i32, i32) {
    %c0_i32 = arith.constant 0 : i32
    %c0_i32_0 = arith.constant 0 : i32
    %c0_i32_1 = arith.constant 0 : i32
    return %arg0, %c0_i32, %c0_i32_0 : i32, i32, i32
  }
}

</mosaic_0001>

<llo_original>
// kernel: time_denoising_forward.1
$region0: #{time_denoising_forward.1}
  #allocation0 [shape = 'u32[]', space=smem, size = 0x4, offset = 0x4, fixed_abs, tag = 'smem constant byte address 0x4 - core index']
  #allocation1 [shape = 'u32[144,128]{1,0:T(1,128)}', space=vmem, size = 0x12000, scoped, tag = 'internal scratch']
  %s0 = inlined_call_operand.vmem [shape: f32[1,16,32], index: 0, kind: input, shape index: {}]
  %s1 = inlined_call_operand.vmem [shape: f32[1,16,32], index: 1, kind: input, shape index: {}]
  %s2 = inlined_call_operand.vmem [shape: f32[16,16], index: 2, kind: input, shape index: {}]
  %s3 = inlined_call_operand.vmem [shape: f32[1,16,16], index: 3, kind: input, shape index: {}]
  %s4 = inlined_call_operand.vmem [shape: f32[7,64,128], index: 4, kind: input, shape index: {}]
  %s5 = inlined_call_operand.vmem [shape: f32[16,128], index: 5, kind: input, shape index: {}]
  %s6 = inlined_call_operand.vmem [shape: f32[1,16,32], index: 6, kind: output, shape index: {}]
  %s7 = sld [smem:[#allocation0]]
  $region34: #{time_denoising_forward.1} parent=0
    _
  %s9 = ssub.s32 1, %s7
  %s10 = scalar_select 0, %s9, %s7
  // Predicated region
  $region2: #{time_denoising_forward.1} parent=0 // pred_check
    _
  $region3: #{time_denoising_forward.1} parent=0 // pred_check_branch
    %12 = sbr.rel (0) target = $region5
  $region4: #{time_denoising_forward.1} parent=0 // pred_region
    _
  $region5: #{time_denoising_forward.1} parent=0 // pred_fallthru
    _
  // Predicated region
  $region6: #{time_denoising_forward.1} parent=0 // pred_check
    _
  $region7: #{time_denoising_forward.1} parent=0 // pred_check_branch
    %14 = sbr.rel (0) target = $region9
  $region8: #{time_denoising_forward.1} parent=0 // pred_region
    _
  $region9: #{time_denoising_forward.1} parent=0 // pred_fallthru
    _
  // Predicated region
  $region10: #{time_denoising_forward.1} parent=0 // pred_check
    _
  $region11: #{time_denoising_forward.1} parent=0 // pred_check_branch
    %16 = sbr.rel (0) target = $region13
  $region12: #{time_denoising_forward.1} parent=0 // pred_region
    _
  $region13: #{time_denoising_forward.1} parent=0 // pred_fallthru
    _
  // Predicated region
  $region14: #{time_denoising_forward.1} parent=0 // pred_check
    _
  $region15: #{time_denoising_forward.1} parent=0 // pred_check_branch
    %18 = sbr.rel (0) target = $region17
  $region16: #{time_denoising_forward.1} parent=0 // pred_region
    _
  $region17: #{time_denoising_forward.1} parent=0 // pred_fallthru
    _
  // Predicated region
  $region18: #{time_denoising_forward.1} parent=0 // pred_check
    _
  $region19: #{time_denoising_forward.1} parent=0 // pred_check_branch
    %20 = sbr.rel (0) target = $region21
  $region20: #{time_denoising_forward.1} parent=0 // pred_region
    _
  $region21: #{time_denoising_forward.1} parent=0 // pred_fallthru
    _
  // Predicated region
  $region22: #{time_denoising_forward.1} parent=0 // pred_check
    _
  $region23: #{time_denoising_forward.1} parent=0 // pred_check_branch
    %22 = sbr.rel (0) target = $region25
  $region24: #{time_denoising_forward.1} parent=0 // pred_region
    _
  $region25: #{time_denoising_forward.1} parent=0 // pred_fallthru
    _
  %v23 = vld [vmem:[%s0] sm:$0xff]
  %v24 = vld [vmem:[%s0 + $0x8] sm:$0xff]
  %v25 = vld [vmem:[%s1] sm:$0xff]
  %v26 = vld [vmem:[%s1 + $0x8] sm:$0xff]
  %v27 = vld [vmem:[%s2] sm:$0xff]
  %v28 = vld [vmem:[%s2 + $0x8] sm:$0xff]
  %v29 = vld [vmem:[%s3] sm:$0xff]
  %v30 = vld [vmem:[%s3 + $0x8] sm:$0xff]
  %v31 = vld [vmem:[%s5] sm:$0xff]
  %v32 = vld [vmem:[%s5 + $0x8] sm:$0xff]
  %v33 = vld [vmem:[%s4] sm:$0xff]
  %v34 = vld [vmem:[%s4 + $0x8] sm:$0xff]
  %v35 = vld [vmem:[%s4 + $0x10] sm:$0xff]
  %v36 = vld [vmem:[%s4 + $0x18] sm:$0xff]
  %v37 = vlaneseq
  %v38 = vshrl.u32 %v37, 7
  %v39 = vsub.s32 0, %v38
  %v40 = vrot.slane %v31, %v39
  %vm41 = vcmask 261120
  %v43 = vsel %vm41, %v23, 0
  %v46 = vsel %vm41, %v24, 0
  %48 = vmatprep.subr.mxu0 0.0
  %49 = vmatpush1.msra.mxu0 %v33
  %50 = vmatprep.subr.mxu0 0.0
  %51 = vmatpush1.msra.mxu0 %v34
  %52 = vmatprep.subr.mxu0 0.0
  %53 = vmatpush1.msra.mxu0 %v35
  %54 = vmatprep.subr.mxu0 0.0
  %55 = vmatpush1.msra.mxu0 %v36
  %56 = vmatprep.subr.mxu0 0.0
  %57 = vmatpush1.msra.mxu0 0.0
  %58 = vmatprep.subr.mxu0 0.0
  %59 = vmatpush1.msra.mxu0 0.0
  %60 = vmatprep.subr.mxu0 0.0
  %61 = vmatpush1.msra.mxu0 0.0
  %62 = vmatprep.subr.mxu0 0.0
  %63 = vmatpush1.msra.mxu0 0.0
  %64 = vmatprep.subr.mxu0 0.0
  %65 = vmatpush1.msra.mxu0 0.0
  %66 = vmatprep.subr.mxu0 0.0
  %67 = vmatpush1.msra.mxu0 0.0
  %68 = vmatprep.subr.mxu0 0.0
  %69 = vmatpush1.msra.mxu0 0.0
  %70 = vmatprep.subr.mxu0 0.0
  %71 = vmatpush1.msra.mxu0 0.0
  %72 = vmatprep.subr.mxu0 0.0
  %73 = vmatpush1.msra.mxu0 0.0
  %74 = vmatprep.subr.mxu0 0.0
  %75 = vmatpush1.msra.mxu0 0.0
  %76 = vmatprep.subr.mxu0 0.0
  %77 = vmatpush1.msra.mxu0 0.0
  %78 = vmatprep.subr.mxu0 0.0
  %79 = vmatpush1.msra.mxu0 0.0
  %80 = vmatprep.subr.mxu0 0.0
  %81 = vmatpush1.msra.mxu0 0.0
  %82 = vmatprep.subr.mxu0 0.0
  %83 = vmatpush1.msra.mxu0 0.0
  %84 = vmatprep.subr.mxu0 0.0
  %85 = vmatpush1.msra.mxu0 0.0
  %86 = vmatprep.subr.mxu0 0.0
  %87 = vmatpush1.msra.mxu0 0.0
  %88 = vmatprep.subr.mxu0 0.0
  %89 = vmatpush1.msra.mxu0 0.0
  %90 = vmatprep.subr.mxu0 0.0
  %91 = vmatpush1.msra.mxu0 0.0
  %92 = vmatprep.subr.mxu0 0.0
  %93 = vmatpush1.msra.mxu0 0.0
  %94 = vmatprep.subr.mxu0 0.0
  %95 = vmatpush1.msra.mxu0 0.0
  %96 = vmatprep.subr.mxu0 0.0
  %97 = vmatpush1.msra.mxu0 0.0
  %98 = vmatprep.subr.mxu0 0.0
  %99 = vmatpush1.msra.mxu0 0.0
  %100 = vmatprep.subr.mxu0 0.0
  %101 = vmatpush1.msra.mxu0 0.0
  %102 = vmatprep.subr.mxu0 0.0
  %103 = vmatpush1.msra.mxu0 0.0
  %104 = vmatprep.subr.mxu0 0.0
  %105 = vmatpush1.msra.mxu0 0.0
  %106 = vmatprep.subr.mxu0 0.0
  %107 = vmatpush1.msra.mxu0 0.0
  %108 = vmatprep.subr.mxu0 0.0
  %109 = vmatpush1.msra.mxu0 0.0
  %110 = vmatprep.subr.mxu0 0.0
  %111 = vmatpush1.msra.mxu0 0.0
  %112 = vmatprep.mubr.f32.mxu0 0.0
  %113 = vmatmul.mubr.f32.gmra.mrb[0].mxu0 %v43
  %v114 = vpop.f32.mrb[0].mxu0
  %v115 = vadd.f32 %v40, %v114
  %v116 = vpop.f32.mrb[0].mxu0
  %117 = vmatprep.mubr.f32.mxu0 0.0
  %118 = vmatmul.mubr.f32.gmra.mrb[0].mxu0 %v46
  %v119 = vpop.f32.mrb[0].mxu0
  %v120 = vadd.f32 %v40, %v119
  %v121 = vpop.f32.mrb[0].mxu0
  %122 = vdwg.mxu0
  %125 = vrot.lane.b32.xlu0 %v115, 96
  %v126 = vpop.permute.xlu0 %125
  %127 = vrot.lane.b32.xlu0 %v120, 96
  %v128 = vpop.permute.xlu0 %127
  %vm129 = vcmask 130048
  %v130 = vsel %vm129, %v115, 0
  %v132 = vsel %vm129, %v120, 0
  %v134 = vsel %vm129, %v126, 0
  %v136 = vsel %vm129, %v128, 0
  %138 = vmatprep.subr.mxu0 0.0
  %139 = vmatpush1.xpose.msra.mxu0 %v134
  %140 = vmatprep.subr.mxu0 0.0
  %141 = vmatpush1.xpose.msra.mxu0 %v136
  %142 = vmatprep.subr.mxu0 0.0
  %143 = vmatpush1.xpose.msra.mxu0 0.0
  %144 = vmatprep.subr.mxu0 0.0
  %145 = vmatpush1.xpose.msra.mxu0 0.0
  %146 = vmatprep.subr.mxu0 0.0
  %147 = vmatpush1.xpose.msra.mxu0 0.0
  %148 = vmatprep.subr.mxu0 0.0
  %149 = vmatpush1.xpose.msra.mxu0 0.0
  %150 = vmatprep.subr.mxu0 0.0
  %151 = vmatpush1.xpose.msra.mxu0 0.0
  %152 = vmatprep.subr.mxu0 0.0
  %153 = vmatpush1.xpose.msra.mxu0 0.0
  %154 = vmatprep.subr.mxu0 0.0
  %155 = vmatpush1.xpose.msra.mxu0 0.0
  %156 = vmatprep.subr.mxu0 0.0
  %157 = vmatpush1.xpose.msra.mxu0 0.0
  %158 = vmatprep.subr.mxu0 0.0
  %159 = vmatpush1.xpose.msra.mxu0 0.0
  %160 = vmatprep.subr.mxu0 0.0
  %161 = vmatpush1.xpose.msra.mxu0 0.0
  %162 = vmatprep.subr.mxu0 0.0
  %163 = vmatpush1.xpose.msra.mxu0 0.0
  %164 = vmatprep.subr.mxu0 0.0
  %165 = vmatpush1.xpose.msra.mxu0 0.0
  %166 = vmatprep.subr.mxu0 0.0
  %167 = vmatpush1.xpose.msra.mxu0 0.0
  %168 = vmatprep.subr.mxu0 0.0
  %169 = vmatpush1.xpose.msra.mxu0 0.0
  %170 = vmatprep.subr.mxu0 0.0
  %171 = vmatpush1.xpose.msra.mxu0 0.0
  %172 = vmatprep.subr.mxu0 0.0
  %173 = vmatpush1.xpose.msra.mxu0 0.0
  %174 = vmatprep.subr.mxu0 0.0
  %175 = vmatpush1.xpose.msra.mxu0 0.0
  %176 = vmatprep.subr.mxu0 0.0
  %177 = vmatpush1.xpose.msra.mxu0 0.0
  %178 = vmatprep.subr.mxu0 0.0
  %179 = vmatpush1.xpose.msra.mxu0 0.0
  %180 = vmatprep.subr.mxu0 0.0
  %181 = vmatpush1.xpose.msra.mxu0 0.0
  %182 = vmatprep.subr.mxu0 0.0
  %183 = vmatpush1.xpose.msra.mxu0 0.0
  %184 = vmatprep.subr.mxu0 0.0
  %185 = vmatpush1.xpose.msra.mxu0 0.0
  %186 = vmatprep.subr.mxu0 0.0
  %187 = vmatpush1.xpose.msra.mxu0 0.0
  %188 = vmatprep.subr.mxu0 0.0
  %189 = vmatpush1.xpose.msra.mxu0 0.0
  %190 = vmatprep.subr.mxu0 0.0
  %191 = vmatpush1.xpose.msra.mxu0 0.0
  %192 = vmatprep.subr.mxu0 0.0
  %193 = vmatpush1.xpose.msra.mxu0 0.0
  %194 = vmatprep.subr.mxu0 0.0
  %195 = vmatpush1.xpose.msra.mxu0 0.0
  %196 = vmatprep.subr.mxu0 0.0
  %197 = vmatpush1.xpose.msra.mxu0 0.0
  %198 = vmatprep.subr.mxu0 0.0
  %199 = vmatpush1.xpose.msra.mxu0 0.0
  %200 = vmatprep.subr.mxu0 0.0
  %201 = vmatpush1.xpose.msra.mxu0 0.0
  %202 = vmatprep.mubr.f32.mxu0 0.0
  %203 = vmatmul.mubr.f32.gmra.mrb[0].mxu0 %v130
  %v204 = vpop.f32.mrb[0].mxu0
  %v205 = vadd.f32 0.0, %v204
  %v206 = vpop.f32.mrb[0].mxu0
  %207 = vmatprep.mubr.f32.mxu0 0.0
  %208 = vmatmul.mubr.f32.gmra.mrb[0].mxu0 %v132
  %v209 = vpop.f32.mrb[0].mxu0
  %v210 = vadd.f32 0.0, %v209
  %v211 = vpop.f32.mrb[0].mxu0
  %212 = vdwg.mxu0
  %v213 = vmul.f32 %v205, 0.25
  %v214 = vmul.f32 %v210, 0.25
  %v215 = vadd.f32 %v213, %v27
  %v216 = vadd.f32 %v214, %v28
  %v217 = vsel %vm129, %v215, -inf
  %218 = vmax.xlane.f32.xlu0 %v217
  %v219 = vpop.xlane.xlu0 %218
  %v220 = vsel %vm129, %v216, -inf
  %221 = vmax.xlane.f32.xlu0 %v220
  %v222 = vpop.xlane.xlu0 %221
  %v223 = vsub.f32 %v215, %v219
  %v224 = vsub.f32 %v216, %v222
  %v225 = vmul.f32 %v223, 1.442695
  %v226 = vpow.pop %v225
  %v227 = vmul.f32 %v224, 1.442695
  %v228 = vpow.pop %v227
  %v229 = vsel %vm129, %v226, 0.0
  %230 = vadd.xlane.f32.xlu0 %v229
  %v231 = vpop.xlane.xlu0 %230
  %v232 = vsel %vm129, %v228, 0.0
  %233 = vadd.xlane.f32.xlu0 %v232
  %v234 = vpop.xlane.xlu0 %233
  %v235 = vrcp.pop %v231
  %v236 = vmul.f32 %v226, %v235
  %v237 = vrcp.pop %v234
  %v238 = vmul.f32 %v228, %v237
  %239 = vrot.lane.b32.xlu0 %v115, 64
  %v240 = vpop.permute.xlu0 %239
  %241 = vrot.lane.b32.xlu0 %v120, 64
  %v242 = vpop.permute.xlu0 %241
  %v246 = vsel %vm129, %v236, 0
  %v249 = vsel %vm129, %v238, 0
  %251 = vmatprep.subr.mxu0 0.0
  %252 = vmatpush1.msra.mxu0 %v240
  %253 = vmatprep.subr.mxu0 0.0
  %254 = vmatpush1.msra.mxu0 %v242
  %255 = vmatprep.subr.mxu0 0.0
  %256 = vmatpush1.msra.mxu0 0.0
  %257 = vmatprep.subr.mxu0 0.0
  %258 = vmatpush1.msra.mxu0 0.0
  %259 = vmatprep.subr.mxu0 0.0
  %260 = vmatpush1.msra.mxu0 0.0
  %261 = vmatprep.subr.mxu0 0.0
  %262 = vmatpush1.msra.mxu0 0.0
  %263 = vmatprep.subr.mxu0 0.0
  %264 = vmatpush1.msra.mxu0 0.0
  %265 = vmatprep.subr.mxu0 0.0
  %266 = vmatpush1.msra.mxu0 0.0
  %267 = vmatprep.subr.mxu0 0.0
  %268 = vmatpush1.msra.mxu0 0.0
  %269 = vmatprep.subr.mxu0 0.0
  %270 = vmatpush1.msra.mxu0 0.0
  %271 = vmatprep.subr.mxu0 0.0
  %272 = vmatpush1.msra.mxu0 0.0
  %273 = vmatprep.subr.mxu0 0.0
  %274 = vmatpush1.msra.mxu0 0.0
  %275 = vmatprep.subr.mxu0 0.0
  %276 = vmatpush1.msra.mxu0 0.0
  %277 = vmatprep.subr.mxu0 0.0
  %278 = vmatpush1.msra.mxu0 0.0
  %279 = vmatprep.subr.mxu0 0.0
  %280 = vmatpush1.msra.mxu0 0.0
  %281 = vmatprep.subr.mxu0 0.0
  %282 = vmatpush1.msra.mxu0 0.0
  %283 = vmatprep.subr.mxu0 0.0
  %284 = vmatpush1.msra.mxu0 0.0
  %285 = vmatprep.subr.mxu0 0.0
  %286 = vmatpush1.msra.mxu0 0.0
  %287 = vmatprep.subr.mxu0 0.0
  %288 = vmatpush1.msra.mxu0 0.0
  %289 = vmatprep.subr.mxu0 0.0
  %290 = vmatpush1.msra.mxu0 0.0
  %291 = vmatprep.subr.mxu0 0.0
  %292 = vmatpush1.msra.mxu0 0.0
  %293 = vmatprep.subr.mxu0 0.0
  %294 = vmatpush1.msra.mxu0 0.0
  %295 = vmatprep.subr.mxu0 0.0
  %296 = vmatpush1.msra.mxu0 0.0
  %297 = vmatprep.subr.mxu0 0.0
  %298 = vmatpush1.msra.mxu0 0.0
  %299 = vmatprep.subr.mxu0 0.0
  %300 = vmatpush1.msra.mxu0 0.0
  %301 = vmatprep.subr.mxu0 0.0
  %302 = vmatpush1.msra.mxu0 0.0
  %303 = vmatprep.subr.mxu0 0.0
  %304 = vmatpush1.msra.mxu0 0.0
  %305 = vmatprep.subr.mxu0 0.0
  %306 = vmatpush1.msra.mxu0 0.0
  %307 = vmatprep.subr.mxu0 0.0
  %308 = vmatpush1.msra.mxu0 0.0
  %309 = vmatprep.subr.mxu0 0.0
  %310 = vmatpush1.msra.mxu0 0.0
  %311 = vmatprep.subr.mxu0 0.0
  %312 = vmatpush1.msra.mxu0 0.0
  %313 = vmatprep.subr.mxu0 0.0
  %314 = vmatpush1.msra.mxu0 0.0
  %315 = vmatprep.mubr.f32.mxu0 0.0
  %316 = vmatmul.mubr.f32.gmra.mrb[0].mxu0 %v246
  %v317 = vpop.f32.mrb[0].mxu0
  %v318 = vadd.f32 0.0, %v317
  %v319 = vpop.f32.mrb[0].mxu0
  %320 = vmatprep.mubr.f32.mxu0 0.0
  %321 = vmatmul.mubr.f32.gmra.mrb[0].mxu0 %v249
  %v322 = vpop.f32.mrb[0].mxu0
  %v323 = vadd.f32 0.0, %v322
  %v324 = vpop.f32.mrb[0].mxu0
  %325 = vdwg.mxu0
  %326 = vrot.lane.b32.xlu0 %v115, 112
  %v327 = vpop.permute.xlu0 %326
  %328 = vrot.lane.b32.xlu0 %v120, 112
  %v329 = vpop.permute.xlu0 %328
  %330 = vrot.lane.b32.xlu0 %v115, 80
  %v331 = vpop.permute.xlu0 %330
  %332 = vrot.lane.b32.xlu0 %v120, 80
  %v333 = vpop.permute.xlu0 %332
  %v334 = vsel %vm129, %v327, 0
  %v336 = vsel %vm129, %v329, 0
  %v338 = vsel %vm129, %v331, 0
  %v340 = vsel %vm129, %v333, 0
  %342 = vmatprep.subr.mxu0 0.0
  %343 = vmatpush1.xpose.msra.mxu0 %v338
  %344 = vmatprep.subr.mxu0 0.0
  %345 = vmatpush1.xpose.msra.mxu0 %v340
  %346 = vmatprep.subr.mxu0 0.0
  %347 = vmatpush1.xpose.msra.mxu0 0.0
  %348 = vmatprep.subr.mxu0 0.0
  %349 = vmatpush1.xpose.msra.mxu0 0.0
  %350 = vmatprep.subr.mxu0 0.0
  %351 = vmatpush1.xpose.msra.mxu0 0.0
  %352 = vmatprep.subr.mxu0 0.0
  %353 = vmatpush1.xpose.msra.mxu0 0.0
  %354 = vmatprep.subr.mxu0 0.0
  %355 = vmatpush1.xpose.msra.mxu0 0.0
  %356 = vmatprep.subr.mxu0 0.0
  %357 = vmatpush1.xpose.msra.mxu0 0.0
  %358 = vmatprep.subr.mxu0 0.0
  %359 = vmatpush1.xpose.msra.mxu0 0.0
  %360 = vmatprep.subr.mxu0 0.0
  %361 = vmatpush1.xpose.msra.mxu0 0.0
  %362 = vmatprep.subr.mxu0 0.0
  %363 = vmatpush1.xpose.msra.mxu0 0.0
  %364 = vmatprep.subr.mxu0 0.0
  %365 = vmatpush1.xpose.msra.mxu0 0.0
  %366 = vmatprep.subr.mxu0 0.0
  %367 = vmatpush1.xpose.msra.mxu0 0.0
  %368 = vmatprep.subr.mxu0 0.0
  %369 = vmatpush1.xpose.msra.mxu0 0.0
  %370 = vmatprep.subr.mxu0 0.0
  %371 = vmatpush1.xpose.msra.mxu0 0.0
  %372 = vmatprep.subr.mxu0 0.0
  %373 = vmatpush1.xpose.msra.mxu0 0.0
  %374 = vmatprep.subr.mxu0 0.0
  %375 = vmatpush1.xpose.msra.mxu0 0.0
  %376 = vmatprep.subr.mxu0 0.0
  %377 = vmatpush1.xpose.msra.mxu0 0.0
  %378 = vmatprep.subr.mxu0 0.0
  %379 = vmatpush1.xpose.msra.mxu0 0.0
  %380 = vmatprep.subr.mxu0 0.0
  %381 = vmatpush1.xpose.msra.mxu0 0.0
  %382 = vmatprep.subr.mxu0 0.0
  %383 = vmatpush1.xpose.msra.mxu0 0.0
  %384 = vmatprep.subr.mxu0 0.0
  %385 = vmatpush1.xpose.msra.mxu0 0.0
  %386 = vmatprep.subr.mxu0 0.0
  %387 = vmatpush1.xpose.msra.mxu0 0.0
  %388 = vmatprep.subr.mxu0 0.0
  %389 = vmatpush1.xpose.msra.mxu0 0.0
  %390 = vmatprep.subr.mxu0 0.0
  %391 = vmatpush1.xpose.msra.mxu0 0.0
  %392 = vmatprep.subr.mxu0 0.0
  %393 = vmatpush1.xpose.msra.mxu0 0.0
  %394 = vmatprep.subr.mxu0 0.0
  %395 = vmatpush1.xpose.msra.mxu0 0.0
  %396 = vmatprep.subr.mxu0 0.0
  %397 = vmatpush1.xpose.msra.mxu0 0.0
  %398 = vmatprep.subr.mxu0 0.0
  %399 = vmatpush1.xpose.msra.mxu0 0.0
  %400 = vmatprep.subr.mxu0 0.0
  %401 = vmatpush1.xpose.msra.mxu0 0.0
  %402 = vmatprep.subr.mxu0 0.0
  %403 = vmatpush1.xpose.msra.mxu0 0.0
  %404 = vmatprep.subr.mxu0 0.0
  %405 = vmatpush1.xpose.msra.mxu0 0.0
  %406 = vmatprep.mubr.f32.mxu0 0.0
  %407 = vmatmul.mubr.f32.gmra.mrb[0].mxu0 %v334
  %v408 = vpop.f32.mrb[0].mxu0
  %v409 = vadd.f32 0.0, %v408
  %v410 = vpop.f32.mrb[0].mxu0
  %411 = vmatprep.mubr.f32.mxu0 0.0
  %412 = vmatmul.mubr.f32.gmra.mrb[0].mxu0 %v336
  %v413 = vpop.f32.mrb[0].mxu0
  %v414 = vadd.f32 0.0, %v413
  %v415 = vpop.f32.mrb[0].mxu0
  %416 = vdwg.mxu0
  %v417 = vmul.f32 %v409, 0.25
  %v418 = vmul.f32 %v414, 0.25
  %v419 = vadd.f32 %v417, %v27
  %v420 = vadd.f32 %v418, %v28
  %v421 = vsel %vm129, %v419, -inf
  %422 = vmax.xlane.f32.xlu0 %v421
  %v423 = vpop.xlane.xlu0 %422
  %v424 = vsel %vm129, %v420, -inf
  %425 = vmax.xlane.f32.xlu0 %v424
  %v426 = vpop.xlane.xlu0 %425
  %v427 = vsub.f32 %v419, %v423
  %v428 = vsub.f32 %v420, %v426
  %v429 = vmul.f32 %v427, 1.442695
  %v430 = vpow.pop %v429
  %v431 = vmul.f32 %v428, 1.442695
  %v432 = vpow.pop %v431
  %v433 = vsel %vm129, %v430, 0.0
  %434 = vadd.xlane.f32.xlu0 %v433
  %v435 = vpop.xlane.xlu0 %434
  %v436 = vsel %vm129, %v432, 0.0
  %437 = vadd.xlane.f32.xlu0 %v436
  %v438 = vpop.xlane.xlu0 %437
  %v439 = vrcp.pop %v435
  %v440 = vmul.f32 %v430, %v439
  %v441 = vrcp.pop %v438
  %v442 = vmul.f32 %v432, %v441
  %443 = vrot.lane.b32.xlu0 %v115, 48
  %v444 = vpop.permute.xlu0 %443
  %445 = vrot.lane.b32.xlu0 %v120, 48
  %v446 = vpop.permute.xlu0 %445
  %v450 = vsel %vm129, %v440, 0
  %v453 = vsel %vm129, %v442, 0
  %455 = vmatprep.subr.mxu0 0.0
  %456 = vmatpush1.msra.mxu0 %v444
  %457 = vmatprep.subr.mxu0 0.0
  %458 = vmatpush1.msra.mxu0 %v446
  %459 = vmatprep.subr.mxu0 0.0
  %460 = vmatpush1.msra.mxu0 0.0
  %461 = vmatprep.subr.mxu0 0.0
  %462 = vmatpush1.msra.mxu0 0.0
  %463 = vmatprep.subr.mxu0 0.0
  %464 = vmatpush1.msra.mxu0 0.0
  %465 = vmatprep.subr.mxu0 0.0
  %466 = vmatpush1.msra.mxu0 0.0
  %467 = vmatprep.subr.mxu0 0.0
  %468 = vmatpush1.msra.mxu0 0.0
  %469 = vmatprep.subr.mxu0 0.0
  %470 = vmatpush1.msra.mxu0 0.0
  %471 = vmatprep.subr.mxu0 0.0
  %472 = vmatpush1.msra.mxu0 0.0
  %473 = vmatprep.subr.mxu0 0.0
  %474 = vmatpush1.msra.mxu0 0.0
  %475 = vmatprep.subr.mxu0 0.0
  %476 = vmatpush1.msra.mxu0 0.0
  %477 = vmatprep.subr.mxu0 0.0
  %478 = vmatpush1.msra.mxu0 0.0
  %479 = vmatprep.subr.mxu0 0.0
  %480 = vmatpush1.msra.mxu0 0.0
  %481 = vmatprep.subr.mxu0 0.0
  %482 = vmatpush1.msra.mxu0 0.0
  %483 = vmatprep.subr.mxu0 0.0
  %484 = vmatpush1.msra.mxu0 0.0
  %485 = vmatprep.subr.mxu0 0.0
  %486 = vmatpush1.msra.mxu0 0.0
  %487 = vmatprep.subr.mxu0 0.0
  %488 = vmatpush1.msra.mxu0 0.0
  %489 = vmatprep.subr.mxu0 0.0
  %490 = vmatpush1.msra.mxu0 0.0
  %491 = vmatprep.subr.mxu0 0.0
  %492 = vmatpush1.msra.mxu0 0.0
  %493 = vmatprep.subr.mxu0 0.0
  %494 = vmatpush1.msra.mxu0 0.0
  %495 = vmatprep.subr.mxu0 0.0
  %496 = vmatpush1.msra.mxu0 0.0
  %497 = vmatprep.subr.mxu0 0.0
  %498 = vmatpush1.msra.mxu0 0.0
  %499 = vmatprep.subr.mxu0 0.0
  %500 = vmatpush1.msra.mxu0 0.0
  %501 = vmatprep.subr.mxu0 0.0
  %502 = vmatpush1.msra.mxu0 0.0
  %503 = vmatprep.subr.mxu0 0.0
  %504 = vmatpush1.msra.mxu0 0.0
  %505 = vmatprep.subr.mxu0 0.0
  %506 = vmatpush1.msra.mxu0 0.0
  %507 = vmatprep.subr.mxu0 0.0
  %508 = vmatpush1.msra.mxu0 0.0
  %509 = vmatprep.subr.mxu0 0.0
  %510 = vmatpush1.msra.mxu0 0.0
  %511 = vmatprep.subr.mxu0 0.0
  %512 = vmatpush1.msra.mxu0 0.0
  %513 = vmatprep.subr.mxu0 0.0
  %514 = vmatpush1.msra.mxu0 0.0
  %515 = vmatprep.subr.mxu0 0.0
  %516 = vmatpush1.msra.mxu0 0.0
  %517 = vmatprep.subr.mxu0 0.0
  %518 = vmatpush1.msra.mxu0 0.0
  %519 = vmatprep.mubr.f32.mxu0 0.0
  %520 = vmatmul.mubr.f32.gmra.mrb[0].mxu0 %v450
  %v521 = vpop.f32.mrb[0].mxu0
  %v522 = vadd.f32 0.0, %v521
  %v523 = vpop.f32.mrb[0].mxu0
  %524 = vmatprep.mubr.f32.mxu0 0.0
  %525 = vmatmul.mubr.f32.gmra.mrb[0].mxu0 %v453
  %v526 = vpop.f32.mrb[0].mxu0
  %v527 = vadd.f32 0.0, %v526
  %v528 = vpop.f32.mrb[0].mxu0
  %529 = vdwg.mxu0
  %532 = vrot.lane.b32.xlu0 %v522, 16
  %v533 = vpop.permute.xlu0 %532
  %534 = vrot.lane.b32.xlu0 %v527, 16
  %v535 = vpop.permute.xlu0 %534
  %v538 = vsel %vm129, %v318, %v533
  %v539 = vsel %vm129, %v323, %v535
  %s540 = scalar_lea.vmem %s4, 64
  %v541 = vld [vmem:[%s540] sm:$0xff]
  %v542 = vld [vmem:[%s540 + $0x8] sm:$0xff]
  %v543 = vld [vmem:[%s540 + $0x10] sm:$0xff]
  %v544 = vld [vmem:[%s540 + $0x18] sm:$0xff]
  %v545 = vlaneseq
  %v546 = vshrl.u32 %v545, 7
  %v547 = vsub.s32 1, %v546
  %v548 = vrot.slane %v31, %v547
  %v550 = vsel %vm41, %v538, 0
  %v553 = vsel %vm41, %v539, 0
  %555 = vmatprep.subr.mxu0 0.0
  %556 = vmatpush1.msra.mxu0 %v541
  %557 = vmatprep.subr.mxu0 0.0
  %558 = vmatpush1.msra.mxu0 %v542
  %559 = vmatprep.subr.mxu0 0.0
  %560 = vmatpush1.msra.mxu0 %v543
  %561 = vmatprep.subr.mxu0 0.0
  %562 = vmatpush1.msra.mxu0 %v544
  %563 = vmatprep.subr.mxu0 0.0
  %564 = vmatpush1.msra.mxu0 0.0
  %565 = vmatprep.subr.mxu0 0.0
  %566 = vmatpush1.msra.mxu0 0.0
  %567 = vmatprep.subr.mxu0 0.0
  %568 = vmatpush1.msra.mxu0 0.0
  %569 = vmatprep.subr.mxu0 0.0
  %570 = vmatpush1.msra.mxu0 0.0
  %571 = vmatprep.subr.mxu0 0.0
  %572 = vmatpush1.msra.mxu0 0.0
  %573 = vmatprep.subr.mxu0 0.0
  %574 = vmatpush1.msra.mxu0 0.0
  %575 = vmatprep.subr.mxu0 0.0
  %576 = vmatpush1.msra.mxu0 0.0
  %577 = vmatprep.subr.mxu0 0.0
  %578 = vmatpush1.msra.mxu0 0.0
  %579 = vmatprep.subr.mxu0 0.0
  %580 = vmatpush1.msra.mxu0 0.0
  %581 = vmatprep.subr.mxu0 0.0
  %582 = vmatpush1.msra.mxu0 0.0
  %583 = vmatprep.subr.mxu0 0.0
  %584 = vmatpush1.msra.mxu0 0.0
  %585 = vmatprep.subr.mxu0 0.0
  %586 = vmatpush1.msra.mxu0 0.0
  %587 = vmatprep.subr.mxu0 0.0
  %588 = vmatpush1.msra.mxu0 0.0
  %589 = vmatprep.subr.mxu0 0.0
  %590 = vmatpush1.msra.mxu0 0.0
  %591 = vmatprep.subr.mxu0 0.0
  %592 = vmatpush1.msra.mxu0 0.0
  %593 = vmatprep.subr.mxu0 0.0
  %594 = vmatpush1.msra.mxu0 0.0
  %595 = vmatprep.subr.mxu0 0.0
  %596 = vmatpush1.msra.mxu0 0.0
  %597 = vmatprep.subr.mxu0 0.0
  %598 = vmatpush1.msra.mxu0 0.0
  %599 = vmatprep.subr.mxu0 0.0
  %600 = vmatpush1.msra.mxu0 0.0
  %601 = vmatprep.subr.mxu0 0.0
  %602 = vmatpush1.msra.mxu0 0.0
  %603 = vmatprep.subr.mxu0 0.0
  %604 = vmatpush1.msra.mxu0 0.0
  %605 = vmatprep.subr.mxu0 0.0
  %606 = vmatpush1.msra.mxu0 0.0
  %607 = vmatprep.subr.mxu0 0.0
  %608 = vmatpush1.msra.mxu0 0.0
  %609 = vmatprep.subr.mxu0 0.0
  %610 = vmatpush1.msra.mxu0 0.0
  %611 = vmatprep.subr.mxu0 0.0
  %612 = vmatpush1.msra.mxu0 0.0
  %613 = vmatprep.subr.mxu0 0.0
  %614 = vmatpush1.msra.mxu0 0.0
  %615 = vmatprep.subr.mxu0 0.0
  %616 = vmatpush1.msra.mxu0 0.0
  %617 = vmatprep.subr.mxu0 0.0
  %618 = vmatpush1.msra.mxu0 0.0
  %619 = vmatprep.mubr.f32.mxu0 0.0
  %620 = vmatmul.mubr.f32.gmra.mrb[0].mxu0 %v550
  %v621 = vpop.f32.mrb[0].mxu0
  %v622 = vadd.f32 %v548, %v621
  %v623 = vpop.f32.mrb[0].mxu0
  %624 = vmatprep.mubr.f32.mxu0 0.0
  %625 = vmatmul.mubr.f32.gmra.mrb[0].mxu0 %v553
  %v626 = vpop.f32.mrb[0].mxu0
  %v627 = vadd.f32 %v548, %v626
  %v628 = vpop.f32.mrb[0].mxu0
  %629 = vdwg.mxu0
  %v630 = vadd.f32 %v23, %v622
  %v631 = vadd.f32 %v24, %v627
  %v632 = vsel %vm41, %v630, 0.0
  %633 = vadd.xlane.f32.xlu0 %v632
  %v634 = vpop.xlane.xlu0 %633
  %v635 = vsel %vm41, %v631, 0.0
  %636 = vadd.xlane.f32.xlu0 %v635
  %v637 = vpop.xlane.xlu0 %636
  %v638 = vrcp.pop 32.0
  %v639 = vmul.f32 %v634, %v638
  %v640 = vmul.f32 %v637, %v638
  %v641 = vsub.f32 %v630, %v639
  %v642 = vsub.f32 %v631, %v640
  %v643 = vmul.f32 %v641, %v641
  %v644 = vmul.f32 %v642, %v642
  %v645 = vsel %vm41, %v643, 0.0
  %646 = vadd.xlane.f32.xlu0 %v645
  %v647 = vpop.xlane.xlu0 %646
  %v648 = vsel %vm41, %v644, 0.0
  %649 = vadd.xlane.f32.xlu0 %v648
  %v650 = vpop.xlane.xlu0 %649
  %v651 = vmul.f32 %v647, %v638
  %v652 = vmul.f32 %v650, %v638
  %v653 = vadd.f32 %v651, 1e-05
  %v654 = vadd.f32 %v652, 1e-05
  %v655 = vrsqrt.pop %v653
  %v656 = vrsqrt.pop %v654
  %v657 = vmul.f32 %v641, %v655
  %v658 = vmul.f32 %v642, %v656
  %v659 = vlaneseq
  %v660 = vshrl.u32 %v659, 7
  %v661 = vsub.s32 7, %v660
  %v662 = vrot.slane %v31, %v661
  %v663 = vmul.f32 %v657, %v662
  %v664 = vmul.f32 %v658, %v662
  %v665 = vlaneseq
  %v666 = vshrl.u32 %v665, 7
  %v667 = vsub.s32 0, %v666
  %v668 = vrot.slane %v32, %v667
  %v669 = vadd.f32 %v663, %v668
  %v670 = vadd.f32 %v664, %v668
  %s671 = scalar_lea.vmem %s4, 128
  %v672 = vld [vmem:[%s671] sm:$0xff]
  %v673 = vld [vmem:[%s671 + $0x8] sm:$0xff]
  %v674 = vld [vmem:[%s671 + $0x10] sm:$0xff]
  %v675 = vld [vmem:[%s671 + $0x18] sm:$0xff]
  %v676 = vlaneseq
  %v677 = vshrl.u32 %v676, 7
  %v678 = vsub.s32 2, %v677
  %v679 = vrot.slane %v31, %v678
  %v681 = vsel %vm41, %v669, 0
  %v684 = vsel %vm41, %v670, 0
  %686 = vmatprep.subr.mxu0 0.0
  %687 = vmatpush1.msra.mxu0 %v672
  %688 = vmatprep.subr.mxu0 0.0
  %689 = vmatpush1.msra.mxu0 %v673
  %690 = vmatprep.subr.mxu0 0.0
  %691 = vmatpush1.msra.mxu0 %v674
  %692 = vmatprep.subr.mxu0 0.0
  %693 = vmatpush1.msra.mxu0 %v675
  %694 = vmatprep.subr.mxu0 0.0
  %695 = vmatpush1.msra.mxu0 0.0
  %696 = vmatprep.subr.mxu0 0.0
  %697 = vmatpush1.msra.mxu0 0.0
  %698 = vmatprep.subr.mxu0 0.0
  %699 = vmatpush1.msra.mxu0 0.0
  %700 = vmatprep.subr.mxu0 0.0
  %701 = vmatpush1.msra.mxu0 0.0
  %702 = vmatprep.subr.mxu0 0.0
  %703 = vmatpush1.msra.mxu0 0.0
  %704 = vmatprep.subr.mxu0 0.0
  %705 = vmatpush1.msra.mxu0 0.0
  %706 = vmatprep.subr.mxu0 0.0
  %707 = vmatpush1.msra.mxu0 0.0
  %708 = vmatprep.subr.mxu0 0.0
  %709 = vmatpush1.msra.mxu0 0.0
  %710 = vmatprep.subr.mxu0 0.0
  %711 = vmatpush1.msra.mxu0 0.0
  %712 = vmatprep.subr.mxu0 0.0
  %713 = vmatpush1.msra.mxu0 0.0
  %714 = vmatprep.subr.mxu0 0.0
  %715 = vmatpush1.msra.mxu0 0.0
  %716 = vmatprep.subr.mxu0 0.0
  %717 = vmatpush1.msra.mxu0 0.0
  %718 = vmatprep.subr.mxu0 0.0
  %719 = vmatpush1.msra.mxu0 0.0
  %720 = vmatprep.subr.mxu0 0.0
  %721 = vmatpush1.msra.mxu0 0.0
  %722 = vmatprep.subr.mxu0 0.0
  %723 = vmatpush1.msra.mxu0 0.0
  %724 = vmatprep.subr.mxu0 0.0
  %725 = vmatpush1.msra.mxu0 0.0
  %726 = vmatprep.subr.mxu0 0.0
  %727 = vmatpush1.msra.mxu0 0.0
  %728 = vmatprep.subr.mxu0 0.0
  %729 = vmatpush1.msra.mxu0 0.0
  %730 = vmatprep.subr.mxu0 0.0
  %731 = vmatpush1.msra.mxu0 0.0
  %732 = vmatprep.subr.mxu0 0.0
  %733 = vmatpush1.msra.mxu0 0.0
  %734 = vmatprep.subr.mxu0 0.0
  %735 = vmatpush1.msra.mxu0 0.0
  %736 = vmatprep.subr.mxu0 0.0
  %737 = vmatpush1.msra.mxu0 0.0
  %738 = vmatprep.subr.mxu0 0.0
  %739 = vmatpush1.msra.mxu0 0.0
  %740 = vmatprep.subr.mxu0 0.0
  %741 = vmatpush1.msra.mxu0 0.0
  %742 = vmatprep.subr.mxu0 0.0
  %743 = vmatpush1.msra.mxu0 0.0
  %744 = vmatprep.subr.mxu0 0.0
  %745 = vmatpush1.msra.mxu0 0.0
  %746 = vmatprep.subr.mxu0 0.0
  %747 = vmatpush1.msra.mxu0 0.0
  %748 = vmatprep.subr.mxu0 0.0
  %749 = vmatpush1.msra.mxu0 0.0
  %750 = vmatprep.mubr.f32.mxu0 0.0
  %751 = vmatmul.mubr.f32.gmra.mrb[0].mxu0 %v681
  %v752 = vpop.f32.mrb[0].mxu0
  %v753 = vadd.f32 %v679, %v752
  %v754 = vpop.f32.mrb[0].mxu0
  %755 = vmatprep.mubr.f32.mxu0 0.0
  %756 = vmatmul.mubr.f32.gmra.mrb[0].mxu0 %v684
  %v757 = vpop.f32.mrb[0].mxu0
  %v758 = vadd.f32 %v679, %v757
  %v759 = vpop.f32.mrb[0].mxu0
  %760 = vdwg.mxu0
  %s761 = scalar_lea.vmem %s4, 192
  %v762 = vld [vmem:[%s761] sm:$0xff]
  %v763 = vld [vmem:[%s761 + $0x8] sm:$0xff]
  %v764 = vld [vmem:[%s761 + $0x10] sm:$0xff]
  %v765 = vld [vmem:[%s761 + $0x18] sm:$0xff]
  %v766 = vlaneseq
  %v767 = vshrl.u32 %v766, 7
  %v768 = vsub.s32 3, %v767
  %v769 = vrot.slane %v31, %v768
  %v771 = vsel %vm41, %v25, 0
  %v774 = vsel %vm41, %v26, 0
  %776 = vmatprep.subr.mxu0 0.0
  %777 = vmatpush1.msra.mxu0 %v762
  %778 = vmatprep.subr.mxu0 0.0
  %779 = vmatpush1.msra.mxu0 %v763
  %780 = vmatprep.subr.mxu0 0.0
  %781 = vmatpush1.msra.mxu0 %v764
  %782 = vmatprep.subr.mxu0 0.0
  %783 = vmatpush1.msra.mxu0 %v765
  %784 = vmatprep.subr.mxu0 0.0
  %785 = vmatpush1.msra.mxu0 0.0
  %786 = vmatprep.subr.mxu0 0.0
  %787 = vmatpush1.msra.mxu0 0.0
  %788 = vmatprep.subr.mxu0 0.0
  %789 = vmatpush1.msra.mxu0 0.0
  %790 = vmatprep.subr.mxu0 0.0
  %791 = vmatpush1.msra.mxu0 0.0
  %792 = vmatprep.subr.mxu0 0.0
  %793 = vmatpush1.msra.mxu0 0.0
  %794 = vmatprep.subr.mxu0 0.0
  %795 = vmatpush1.msra.mxu0 0.0
  %796 = vmatprep.subr.mxu0 0.0
  %797 = vmatpush1.msra.mxu0 0.0
  %798 = vmatprep.subr.mxu0 0.0
  %799 = vmatpush1.msra.mxu0 0.0
  %800 = vmatprep.subr.mxu0 0.0
  %801 = vmatpush1.msra.mxu0 0.0
  %802 = vmatprep.subr.mxu0 0.0
  %803 = vmatpush1.msra.mxu0 0.0
  %804 = vmatprep.subr.mxu0 0.0
  %805 = vmatpush1.msra.mxu0 0.0
  %806 = vmatprep.subr.mxu0 0.0
  %807 = vmatpush1.msra.mxu0 0.0
  %808 = vmatprep.subr.mxu0 0.0
  %809 = vmatpush1.msra.mxu0 0.0
  %810 = vmatprep.subr.mxu0 0.0
  %811 = vmatpush1.msra.mxu0 0.0
  %812 = vmatprep.subr.mxu0 0.0
  %813 = vmatpush1.msra.mxu0 0.0
  %814 = vmatprep.subr.mxu0 0.0
  %815 = vmatpush1.msra.mxu0 0.0
  %816 = vmatprep.subr.mxu0 0.0
  %817 = vmatpush1.msra.mxu0 0.0
  %818 = vmatprep.subr.mxu0 0.0
  %819 = vmatpush1.msra.mxu0 0.0
  %820 = vmatprep.subr.mxu0 0.0
  %821 = vmatpush1.msra.mxu0 0.0
  %822 = vmatprep.subr.mxu0 0.0
  %823 = vmatpush1.msra.mxu0 0.0
  %824 = vmatprep.subr.mxu0 0.0
  %825 = vmatpush1.msra.mxu0 0.0
  %826 = vmatprep.subr.mxu0 0.0
  %827 = vmatpush1.msra.mxu0 0.0
  %828 = vmatprep.subr.mxu0 0.0
  %829 = vmatpush1.msra.mxu0 0.0
  %830 = vmatprep.subr.mxu0 0.0
  %831 = vmatpush1.msra.mxu0 0.0
  %832 = vmatprep.subr.mxu0 0.0
  %833 = vmatpush1.msra.mxu0 0.0
  %834 = vmatprep.subr.mxu0 0.0
  %835 = vmatpush1.msra.mxu0 0.0
  %836 = vmatprep.subr.mxu0 0.0
  %837 = vmatpush1.msra.mxu0 0.0
  %838 = vmatprep.subr.mxu0 0.0
  %839 = vmatpush1.msra.mxu0 0.0
  %840 = vmatprep.mubr.f32.mxu0 0.0
  %841 = vmatmul.mubr.f32.gmra.mrb[0].mxu0 %v771
  %v842 = vpop.f32.mrb[0].mxu0
  %v843 = vadd.f32 %v769, %v842
  %v844 = vpop.f32.mrb[0].mxu0
  %845 = vmatprep.mubr.f32.mxu0 0.0
  %846 = vmatmul.mubr.f32.gmra.mrb[0].mxu0 %v774
  %v847 = vpop.f32.mrb[0].mxu0
  %v848 = vadd.f32 %v769, %v847
  %v849 = vpop.f32.mrb[0].mxu0
  %850 = vdwg.mxu0
  %v852 = vsel %vm129, %v753, 0
  %v855 = vsel %vm129, %v758, 0
  %v858 = vsel %vm129, %v843, 0
  %v861 = vsel %vm129, %v848, 0
  %863 = vmatprep.subr.mxu0 0.0
  %864 = vmatpush1.xpose.msra.mxu0 %v858
  %865 = vmatprep.subr.mxu0 0.0
  %866 = vmatpush1.xpose.msra.mxu0 %v861
  %867 = vmatprep.subr.mxu0 0.0
  %868 = vmatpush1.xpose.msra.mxu0 0.0
  %869 = vmatprep.subr.mxu0 0.0
  %870 = vmatpush1.xpose.msra.mxu0 0.0
  %871 = vmatprep.subr.mxu0 0.0
  %872 = vmatpush1.xpose.msra.mxu0 0.0
  %873 = vmatprep.subr.mxu0 0.0
  %874 = vmatpush1.xpose.msra.mxu0 0.0
  %875 = vmatprep.subr.mxu0 0.0
  %876 = vmatpush1.xpose.msra.mxu0 0.0
  %877 = vmatprep.subr.mxu0 0.0
  %878 = vmatpush1.xpose.msra.mxu0 0.0
  %879 = vmatprep.subr.mxu0 0.0
  %880 = vmatpush1.xpose.msra.mxu0 0.0
  %881 = vmatprep.subr.mxu0 0.0
  %882 = vmatpush1.xpose.msra.mxu0 0.0
  %883 = vmatprep.subr.mxu0 0.0
  %884 = vmatpush1.xpose.msra.mxu0 0.0
  %885 = vmatprep.subr.mxu0 0.0
  %886 = vmatpush1.xpose.msra.mxu0 0.0
  %887 = vmatprep.subr.mxu0 0.0
  %888 = vmatpush1.xpose.msra.mxu0 0.0
  %889 = vmatprep.subr.mxu0 0.0
  %890 = vmatpush1.xpose.msra.mxu0 0.0
  %891 = vmatprep.subr.mxu0 0.0
  %892 = vmatpush1.xpose.msra.mxu0 0.0
  %893 = vmatprep.subr.mxu0 0.0
  %894 = vmatpush1.xpose.msra.mxu0 0.0
  %895 = vmatprep.subr.mxu0 0.0
  %896 = vmatpush1.xpose.msra.mxu0 0.0
  %897 = vmatprep.subr.mxu0 0.0
  %898 = vmatpush1.xpose.msra.mxu0 0.0
  %899 = vmatprep.subr.mxu0 0.0
  %900 = vmatpush1.xpose.msra.mxu0 0.0
  %901 = vmatprep.subr.mxu0 0.0
  %902 = vmatpush1.xpose.msra.mxu0 0.0
  %903 = vmatprep.subr.mxu0 0.0
  %904 = vmatpush1.xpose.msra.mxu0 0.0
  %905 = vmatprep.subr.mxu0 0.0
  %906 = vmatpush1.xpose.msra.mxu0 0.0
  %907 = vmatprep.subr.mxu0 0.0
  %908 = vmatpush1.xpose.msra.mxu0 0.0
  %909 = vmatprep.subr.mxu0 0.0
  %910 = vmatpush1.xpose.msra.mxu0 0.0
  %911 = vmatprep.subr.mxu0 0.0
  %912 = vmatpush1.xpose.msra.mxu0 0.0
  %913 = vmatprep.subr.mxu0 0.0
  %914 = vmatpush1.xpose.msra.mxu0 0.0
  %915 = vmatprep.subr.mxu0 0.0
  %916 = vmatpush1.xpose.msra.mxu0 0.0
  %917 = vmatprep.subr.mxu0 0.0
  %918 = vmatpush1.xpose.msra.mxu0 0.0
  %919 = vmatprep.subr.mxu0 0.0
  %920 = vmatpush1.xpose.msra.mxu0 0.0
  %921 = vmatprep.subr.mxu0 0.0
  %922 = vmatpush1.xpose.msra.mxu0 0.0
  %923 = vmatprep.subr.mxu0 0.0
  %924 = vmatpush1.xpose.msra.mxu0 0.0
  %925 = vmatprep.subr.mxu0 0.0
  %926 = vmatpush1.xpose.msra.mxu0 0.0
  %927 = vmatprep.mubr.f32.mxu0 0.0
  %928 = vmatmul.mubr.f32.gmra.mrb[0].mxu0 %v852
  %v929 = vpop.f32.mrb[0].mxu0
  %v930 = vadd.f32 0.0, %v929
  %v931 = vpop.f32.mrb[0].mxu0
  %932 = vmatprep.mubr.f32.mxu0 0.0
  %933 = vmatmul.mubr.f32.gmra.mrb[0].mxu0 %v855
  %v934 = vpop.f32.mrb[0].mxu0
  %v935 = vadd.f32 0.0, %v934
  %v936 = vpop.f32.mrb[0].mxu0
  %937 = vdwg.mxu0
  %v938 = vmul.f32 %v930, 0.25
  %v939 = vmul.f32 %v935, 0.25
  %v940 = vadd.f32 %v938, %v29
  %v941 = vadd.f32 %v939, %v30
  %v942 = vsel %vm129, %v940, -inf
  %943 = vmax.xlane.f32.xlu0 %v942
  %v944 = vpop.xlane.xlu0 %943
  %v945 = vsel %vm129, %v941, -inf
  %946 = vmax.xlane.f32.xlu0 %v945
  %v947 = vpop.xlane.xlu0 %946
  %v948 = vsub.f32 %v940, %v944
  %v949 = vsub.f32 %v941, %v947
  %v950 = vmul.f32 %v948, 1.442695
  %v951 = vpow.pop %v950
  %v952 = vmul.f32 %v949, 1.442695
  %v953 = vpow.pop %v952
  %v954 = vsel %vm129, %v951, 0.0
  %955 = vadd.xlane.f32.xlu0 %v954
  %v956 = vpop.xlane.xlu0 %955
  %v957 = vsel %vm129, %v953, 0.0
  %958 = vadd.xlane.f32.xlu0 %v957
  %v959 = vpop.xlane.xlu0 %958
  %v960 = vrcp.pop %v956
  %v961 = vmul.f32 %v951, %v960
  %v962 = vrcp.pop %v959
  %v963 = vmul.f32 %v953, %v962
  %964 = vrot.lane.b32.xlu0 %v843, 96
  %v965 = vpop.permute.xlu0 %964
  %966 = vrot.lane.b32.xlu0 %v848, 96
  %v967 = vpop.permute.xlu0 %966
  %v971 = vsel %vm129, %v961, 0
  %v974 = vsel %vm129, %v963, 0
  %976 = vmatprep.subr.mxu0 0.0
  %977 = vmatpush1.msra.mxu0 %v965
  %978 = vmatprep.subr.mxu0 0.0
  %979 = vmatpush1.msra.mxu0 %v967
  %980 = vmatprep.subr.mxu0 0.0
  %981 = vmatpush1.msra.mxu0 0.0
  %982 = vmatprep.subr.mxu0 0.0
  %983 = vmatpush1.msra.mxu0 0.0
  %984 = vmatprep.subr.mxu0 0.0
  %985 = vmatpush1.msra.mxu0 0.0
  %986 = vmatprep.subr.mxu0 0.0
  %987 = vmatpush1.msra.mxu0 0.0
  %988 = vmatprep.subr.mxu0 0.0
  %989 = vmatpush1.msra.mxu0 0.0
  %990 = vmatprep.subr.mxu0 0.0
  %991 = vmatpush1.msra.mxu0 0.0
  %992 = vmatprep.subr.mxu0 0.0
  %993 = vmatpush1.msra.mxu0 0.0
  %994 = vmatprep.subr.mxu0 0.0
  %995 = vmatpush1.msra.mxu0 0.0
  %996 = vmatprep.subr.mxu0 0.0
  %997 = vmatpush1.msra.mxu0 0.0
  %998 = vmatprep.subr.mxu0 0.0
  %999 = vmatpush1.msra.mxu0 0.0
  %1000 = vmatprep.subr.mxu0 0.0
  %1001 = vmatpush1.msra.mxu0 0.0
  %1002 = vmatprep.subr.mxu0 0.0
  %1003 = vmatpush1.msra.mxu0 0.0
  %1004 = vmatprep.subr.mxu0 0.0
  %1005 = vmatpush1.msra.mxu0 0.0
  %1006 = vmatprep.subr.mxu0 0.0
  %1007 = vmatpush1.msra.mxu0 0.0
  %1008 = vmatprep.subr.mxu0 0.0
  %1009 = vmatpush1.msra.mxu0 0.0
  %1010 = vmatprep.subr.mxu0 0.0
  %1011 = vmatpush1.msra.mxu0 0.0
  %1012 = vmatprep.subr.mxu0 0.0
  %1013 = vmatpush1.msra.mxu0 0.0
  %1014 = vmatprep.subr.mxu0 0.0
  %1015 = vmatpush1.msra.mxu0 0.0
  %1016 = vmatprep.subr.mxu0 0.0
  %1017 = vmatpush1.msra.mxu0 0.0
  %1018 = vmatprep.subr.mxu0 0.0
  %1019 = vmatpush1.msra.mxu0 0.0
  %1020 = vmatprep.subr.mxu0 0.0
  %1021 = vmatpush1.msra.mxu0 0.0
  %1022 = vmatprep.subr.mxu0 0.0
  %1023 = vmatpush1.msra.mxu0 0.0
  %1024 = vmatprep.subr.mxu0 0.0
  %1025 = vmatpush1.msra.mxu0 0.0
  %1026 = vmatprep.subr.mxu0 0.0
  %1027 = vmatpush1.msra.mxu0 0.0
  %1028 = vmatprep.subr.mxu0 0.0
  %1029 = vmatpush1.msra.mxu0 0.0
  %1030 = vmatprep.subr.mxu0 0.0
  %1031 = vmatpush1.msra.mxu0 0.0
  %1032 = vmatprep.subr.mxu0 0.0
  %1033 = vmatpush1.msra.mxu0 0.0
  %1034 = vmatprep.subr.mxu0 0.0
  %1035 = vmatpush1.msra.mxu0 0.0
  %1036 = vmatprep.subr.mxu0 0.0
  %1037 = vmatpush1.msra.mxu0 0.0
  %1038 = vmatprep.subr.mxu0 0.0
  %1039 = vmatpush1.msra.mxu0 0.0
  %1040 = vmatprep.mubr.f32.mxu0 0.0
  %1041 = vmatmul.mubr.f32.gmra.mrb[0].mxu0 %v971
  %v1042 = vpop.f32.mrb[0].mxu0
  %v1043 = vadd.f32 0.0, %v1042
  %v1044 = vpop.f32.mrb[0].mxu0
  %1045 = vmatprep.mubr.f32.mxu0 0.0
  %1046 = vmatmul.mubr.f32.gmra.mrb[0].mxu0 %v974
  %v1047 = vpop.f32.mrb[0].mxu0
  %v1048 = vadd.f32 0.0, %v1047
  %v1049 = vpop.f32.mrb[0].mxu0
  %1050 = vdwg.mxu0
  %1051 = vrot.lane.b32.xlu0 %v753, 112
  %v1052 = vpop.permute.xlu0 %1051
  %1053 = vrot.lane.b32.xlu0 %v758, 112
  %v1054 = vpop.permute.xlu0 %1053
  %1055 = vrot.lane.b32.xlu0 %v843, 112
  %v1056 = vpop.permute.xlu0 %1055
  %1057 = vrot.lane.b32.xlu0 %v848, 112
  %v1058 = vpop.permute.xlu0 %1057
  %v1059 = vsel %vm129, %v1052, 0
  %v1061 = vsel %vm129, %v1054, 0
  %v1063 = vsel %vm129, %v1056, 0
  %v1065 = vsel %vm129, %v1058, 0
  %1067 = vmatprep.subr.mxu0 0.0
  %1068 = vmatpush1.xpose.msra.mxu0 %v1063
  %1069 = vmatprep.subr.mxu0 0.0
  %1070 = vmatpush1.xpose.msra.mxu0 %v1065
  %1071 = vmatprep.subr.mxu0 0.0
  %1072 = vmatpush1.xpose.msra.mxu0 0.0
  %1073 = vmatprep.subr.mxu0 0.0
  %1074 = vmatpush1.xpose.msra.mxu0 0.0
  %1075 = vmatprep.subr.mxu0 0.0
  %1076 = vmatpush1.xpose.msra.mxu0 0.0
  %1077 = vmatprep.subr.mxu0 0.0
  %1078 = vmatpush1.xpose.msra.mxu0 0.0
  %1079 = vmatprep.subr.mxu0 0.0
  %1080 = vmatpush1.xpose.msra.mxu0 0.0
  %1081 = vmatprep.subr.mxu0 0.0
  %1082 = vmatpush1.xpose.msra.mxu0 0.0
  %1083 = vmatprep.subr.mxu0 0.0
  %1084 = vmatpush1.xpose.msra.mxu0 0.0
  %1085 = vmatprep.subr.mxu0 0.0
  %1086 = vmatpush1.xpose.msra.mxu0 0.0
  %1087 = vmatprep.subr.mxu0 0.0
  %1088 = vmatpush1.xpose.msra.mxu0 0.0
  %1089 = vmatprep.subr.mxu0 0.0
  %1090 = vmatpush1.xpose.msra.mxu0 0.0
  %1091 = vmatprep.subr.mxu0 0.0
  %1092 = vmatpush1.xpose.msra.mxu0 0.0
  %1093 = vmatprep.subr.mxu0 0.0
  %1094 = vmatpush1.xpose.msra.mxu0 0.0
  %1095 = vmatprep.subr.mxu0 0.0
  %1096 = vmatpush1.xpose.msra.mxu0 0.0
  %1097 = vmatprep.subr.mxu0 0.0
  %1098 = vmatpush1.xpose.msra.mxu0 0.0
  %1099 = vmatprep.subr.mxu0 0.0
  %1100 = vmatpush1.xpose.msra.mxu0 0.0
  %1101 = vmatprep.subr.mxu0 0.0
  %1102 = vmatpush1.xpose.msra.mxu0 0.0
  %1103 = vmatprep.subr.mxu0 0.0
  %1104 = vmatpush1.xpose.msra.mxu0 0.0
  %1105 = vmatprep.subr.mxu0 0.0
  %1106 = vmatpush1.xpose.msra.mxu0 0.0
  %1107 = vmatprep.subr.mxu0 0.0
  %1108 = vmatpush1.xpose.msra.mxu0 0.0
  %1109 = vmatprep.subr.mxu0 0.0
  %1110 = vmatpush1.xpose.msra.mxu0 0.0
  %1111 = vmatprep.subr.mxu0 0.0
  %1112 = vmatpush1.xpose.msra.mxu0 0.0
  %1113 = vmatprep.subr.mxu0 0.0
  %1114 = vmatpush1.xpose.msra.mxu0 0.0
  %1115 = vmatprep.subr.mxu0 0.0
  %1116 = vmatpush1.xpose.msra.mxu0 0.0
  %1117 = vmatprep.subr.mxu0 0.0
  %1118 = vmatpush1.xpose.msra.mxu0 0.0
  %1119 = vmatprep.subr.mxu0 0.0
  %1120 = vmatpush1.xpose.msra.mxu0 0.0
  %1121 = vmatprep.subr.mxu0 0.0
  %1122 = vmatpush1.xpose.msra.mxu0 0.0
  %1123 = vmatprep.subr.mxu0 0.0
  %1124 = vmatpush1.xpose.msra.mxu0 0.0
  %1125 = vmatprep.subr.mxu0 0.0
  %1126 = vmatpush1.xpose.msra.mxu0 0.0
  %1127 = vmatprep.subr.mxu0 0.0
  %1128 = vmatpush1.xpose.msra.mxu0 0.0
  %1129 = vmatprep.subr.mxu0 0.0
  %1130 = vmatpush1.xpose.msra.mxu0 0.0
  %1131 = vmatprep.mubr.f32.mxu0 0.0
  %1132 = vmatmul.mubr.f32.gmra.mrb[0].mxu0 %v1059
  %v1133 = vpop.f32.mrb[0].mxu0
  %v1134 = vadd.f32 0.0, %v1133
  %v1135 = vpop.f32.mrb[0].mxu0
  %1136 = vmatprep.mubr.f32.mxu0 0.0
  %1137 = vmatmul.mubr.f32.gmra.mrb[0].mxu0 %v1061
  %v1138 = vpop.f32.mrb[0].mxu0
  %v1139 = vadd.f32 0.0, %v1138
  %v1140 = vpop.f32.mrb[0].mxu0
  %1141 = vdwg.mxu0
  %v1142 = vmul.f32 %v1134, 0.25
  %v1143 = vmul.f32 %v1139, 0.25
  %v1144 = vadd.f32 %v1142, %v29
  %v1145 = vadd.f32 %v1143, %v30
  %v1146 = vsel %vm129, %v1144, -inf
  %1147 = vmax.xlane.f32.xlu0 %v1146
  %v1148 = vpop.xlane.xlu0 %1147
  %v1149 = vsel %vm129, %v1145, -inf
  %1150 = vmax.xlane.f32.xlu0 %v1149
  %v1151 = vpop.xlane.xlu0 %1150
  %v1152 = vsub.f32 %v1144, %v1148
  %v1153 = vsub.f32 %v1145, %v1151
  %v1154 = vmul.f32 %v1152, 1.442695
  %v1155 = vpow.pop %v1154
  %v1156 = vmul.f32 %v1153, 1.442695
  %v1157 = vpow.pop %v1156
  %v1158 = vsel %vm129, %v1155, 0.0
  %1159 = vadd.xlane.f32.xlu0 %v1158
  %v1160 = vpop.xlane.xlu0 %1159
  %v1161 = vsel %vm129, %v1157, 0.0
  %1162 = vadd.xlane.f32.xlu0 %v1161
  %v1163 = vpop.xlane.xlu0 %1162
  %v1164 = vrcp.pop %v1160
  %v1165 = vmul.f32 %v1155, %v1164
  %v1166 = vrcp.pop %v1163
  %v1167 = vmul.f32 %v1157, %v1166
  %1168 = vrot.lane.b32.xlu0 %v843, 80
  %v1169 = vpop.permute.xlu0 %1168
  %1170 = vrot.lane.b32.xlu0 %v848, 80
  %v1171 = vpop.permute.xlu0 %1170
  %v1175 = vsel %vm129, %v1165, 0
  %v1178 = vsel %vm129, %v1167, 0
  %1180 = vmatprep.subr.mxu0 0.0
  %1181 = vmatpush1.msra.mxu0 %v1169
  %1182 = vmatprep.subr.mxu0 0.0
  %1183 = vmatpush1.msra.mxu0 %v1171
  %1184 = vmatprep.subr.mxu0 0.0
  %1185 = vmatpush1.msra.mxu0 0.0
  %1186 = vmatprep.subr.mxu0 0.0
  %1187 = vmatpush1.msra.mxu0 0.0
  %1188 = vmatprep.subr.mxu0 0.0
  %1189 = vmatpush1.msra.mxu0 0.0
  %1190 = vmatprep.subr.mxu0 0.0
  %1191 = vmatpush1.msra.mxu0 0.0
  %1192 = vmatprep.subr.mxu0 0.0
  %1193 = vmatpush1.msra.mxu0 0.0
  %1194 = vmatprep.subr.mxu0 0.0
  %1195 = vmatpush1.msra.mxu0 0.0
  %1196 = vmatprep.subr.mxu0 0.0
  %1197 = vmatpush1.msra.mxu0 0.0
  %1198 = vmatprep.subr.mxu0 0.0
  %1199 = vmatpush1.msra.mxu0 0.0
  %1200 = vmatprep.subr.mxu0 0.0
  %1201 = vmatpush1.msra.mxu0 0.0
  %1202 = vmatprep.subr.mxu0 0.0
  %1203 = vmatpush1.msra.mxu0 0.0
  %1204 = vmatprep.subr.mxu0 0.0
  %1205 = vmatpush1.msra.mxu0 0.0
  %1206 = vmatprep.subr.mxu0 0.0
  %1207 = vmatpush1.msra.mxu0 0.0
  %1208 = vmatprep.subr.mxu0 0.0
  %1209 = vmatpush1.msra.mxu0 0.0
  %1210 = vmatprep.subr.mxu0 0.0
  %1211 = vmatpush1.msra.mxu0 0.0
  %1212 = vmatprep.subr.mxu0 0.0
  %1213 = vmatpush1.msra.mxu0 0.0
  %1214 = vmatprep.subr.mxu0 0.0
  %1215 = vmatpush1.msra.mxu0 0.0
  %1216 = vmatprep.subr.mxu0 0.0
  %1217 = vmatpush1.msra.mxu0 0.0
  %1218 = vmatprep.subr.mxu0 0.0
  %1219 = vmatpush1.msra.mxu0 0.0
  %1220 = vmatprep.subr.mxu0 0.0
  %1221 = vmatpush1.msra.mxu0 0.0
  %1222 = vmatprep.subr.mxu0 0.0
  %1223 = vmatpush1.msra.mxu0 0.0
  %1224 = vmatprep.subr.mxu0 0.0
  %1225 = vmatpush1.msra.mxu0 0.0
  %1226 = vmatprep.subr.mxu0 0.0
  %1227 = vmatpush1.msra.mxu0 0.0
  %1228 = vmatprep.subr.mxu0 0.0
  %1229 = vmatpush1.msra.mxu0 0.0
  %1230 = vmatprep.subr.mxu0 0.0
  %1231 = vmatpush1.msra.mxu0 0.0
  %1232 = vmatprep.subr.mxu0 0.0
  %1233 = vmatpush1.msra.mxu0 0.0
  %1234 = vmatprep.subr.mxu0 0.0
  %1235 = vmatpush1.msra.mxu0 0.0
  %1236 = vmatprep.subr.mxu0 0.0
  %1237 = vmatpush1.msra.mxu0 0.0
  %1238 = vmatprep.subr.mxu0 0.0
  %1239 = vmatpush1.msra.mxu0 0.0
  %1240 = vmatprep.subr.mxu0 0.0
  %1241 = vmatpush1.msra.mxu0 0.0
  %1242 = vmatprep.subr.mxu0 0.0
  %1243 = vmatpush1.msra.mxu0 0.0
  %1244 = vmatprep.mubr.f32.mxu0 0.0
  %1245 = vmatmul.mubr.f32.gmra.mrb[0].mxu0 %v1175
  %v1246 = vpop.f32.mrb[0].mxu0
  %v1247 = vadd.f32 0.0, %v1246
  %v1248 = vpop.f32.mrb[0].mxu0
  %1249 = vmatprep.mubr.f32.mxu0 0.0
  %1250 = vmatmul.mubr.f32.gmra.mrb[0].mxu0 %v1178
  %v1251 = vpop.f32.mrb[0].mxu0
  %v1252 = vadd.f32 0.0, %v1251
  %v1253 = vpop.f32.mrb[0].mxu0
  %1254 = vdwg.mxu0
  %1257 = vrot.lane.b32.xlu0 %v1247, 16
  %v1258 = vpop.permute.xlu0 %1257
  %1259 = vrot.lane.b32.xlu0 %v1252, 16
  %v1260 = vpop.permute.xlu0 %1259
  %v1263 = vsel %vm129, %v1043, %v1258
  %v1264 = vsel %vm129, %v1048, %v1260
  %s1265 = scalar_lea.vmem %s4, 256
  %v1266 = vld [vmem:[%s1265] sm:$0xff]
  %v1267 = vld [vmem:[%s1265 + $0x8] sm:$0xff]
  %v1268 = vld [vmem:[%s1265 + $0x10] sm:$0xff]
  %v1269 = vld [vmem:[%s1265 + $0x18] sm:$0xff]
  %v1270 = vlaneseq
  %v1271 = vshrl.u32 %v1270, 7
  %v1272 = vsub.s32 4, %v1271
  %v1273 = vrot.slane %v31, %v1272
  %v1275 = vsel %vm41, %v1263, 0
  %v1278 = vsel %vm41, %v1264, 0
  %1280 = vmatprep.subr.mxu0 0.0
  %1281 = vmatpush1.msra.mxu0 %v1266
  %1282 = vmatprep.subr.mxu0 0.0
  %1283 = vmatpush1.msra.mxu0 %v1267
  %1284 = vmatprep.subr.mxu0 0.0
  %1285 = vmatpush1.msra.mxu0 %v1268
  %1286 = vmatprep.subr.mxu0 0.0
  %1287 = vmatpush1.msra.mxu0 %v1269
  %1288 = vmatprep.subr.mxu0 0.0
  %1289 = vmatpush1.msra.mxu0 0.0
  %1290 = vmatprep.subr.mxu0 0.0
  %1291 = vmatpush1.msra.mxu0 0.0
  %1292 = vmatprep.subr.mxu0 0.0
  %1293 = vmatpush1.msra.mxu0 0.0
  %1294 = vmatprep.subr.mxu0 0.0
  %1295 = vmatpush1.msra.mxu0 0.0
  %1296 = vmatprep.subr.mxu0 0.0
  %1297 = vmatpush1.msra.mxu0 0.0
  %1298 = vmatprep.subr.mxu0 0.0
  %1299 = vmatpush1.msra.mxu0 0.0
  %1300 = vmatprep.subr.mxu0 0.0
  %1301 = vmatpush1.msra.mxu0 0.0
  %1302 = vmatprep.subr.mxu0 0.0
  %1303 = vmatpush1.msra.mxu0 0.0
  %1304 = vmatprep.subr.mxu0 0.0
  %1305 = vmatpush1.msra.mxu0 0.0
  %1306 = vmatprep.subr.mxu0 0.0
  %1307 = vmatpush1.msra.mxu0 0.0
  %1308 = vmatprep.subr.mxu0 0.0
  %1309 = vmatpush1.msra.mxu0 0.0
  %1310 = vmatprep.subr.mxu0 0.0
  %1311 = vmatpush1.msra.mxu0 0.0
  %1312 = vmatprep.subr.mxu0 0.0
  %1313 = vmatpush1.msra.mxu0 0.0
  %1314 = vmatprep.subr.mxu0 0.0
  %1315 = vmatpush1.msra.mxu0 0.0
  %1316 = vmatprep.subr.mxu0 0.0
  %1317 = vmatpush1.msra.mxu0 0.0
  %1318 = vmatprep.subr.mxu0 0.0
  %1319 = vmatpush1.msra.mxu0 0.0
  %1320 = vmatprep.subr.mxu0 0.0
  %1321 = vmatpush1.msra.mxu0 0.0
  %1322 = vmatprep.subr.mxu0 0.0
  %1323 = vmatpush1.msra.mxu0 0.0
  %1324 = vmatprep.subr.mxu0 0.0
  %1325 = vmatpush1.msra.mxu0 0.0
  %1326 = vmatprep.subr.mxu0 0.0
  %1327 = vmatpush1.msra.mxu0 0.0
  %1328 = vmatprep.subr.mxu0 0.0
  %1329 = vmatpush1.msra.mxu0 0.0
  %1330 = vmatprep.subr.mxu0 0.0
  %1331 = vmatpush1.msra.mxu0 0.0
  %1332 = vmatprep.subr.mxu0 0.0
  %1333 = vmatpush1.msra.mxu0 0.0
  %1334 = vmatprep.subr.mxu0 0.0
  %1335 = vmatpush1.msra.mxu0 0.0
  %1336 = vmatprep.subr.mxu0 0.0
  %1337 = vmatpush1.msra.mxu0 0.0
  %1338 = vmatprep.subr.mxu0 0.0
  %1339 = vmatpush1.msra.mxu0 0.0
  %1340 = vmatprep.subr.mxu0 0.0
  %1341 = vmatpush1.msra.mxu0 0.0
  %1342 = vmatprep.subr.mxu0 0.0
  %1343 = vmatpush1.msra.mxu0 0.0
  %1344 = vmatprep.mubr.f32.mxu0 0.0
  %1345 = vmatmul.mubr.f32.gmra.mrb[0].mxu0 %v1275
  %v1346 = vpop.f32.mrb[0].mxu0
  %v1347 = vadd.f32 %v1273, %v1346
  %v1348 = vpop.f32.mrb[0].mxu0
  %1349 = vmatprep.mubr.f32.mxu0 0.0
  %1350 = vmatmul.mubr.f32.gmra.mrb[0].mxu0 %v1278
  %v1351 = vpop.f32.mrb[0].mxu0
  %v1352 = vadd.f32 %v1273, %v1351
  %v1353 = vpop.f32.mrb[0].mxu0
  %1354 = vdwg.mxu0
  %v1355 = vadd.f32 %v669, %v1347
  %v1356 = vadd.f32 %v670, %v1352
  %v1357 = vsel %vm41, %v1355, 0.0
  %1358 = vadd.xlane.f32.xlu0 %v1357
  %v1359 = vpop.xlane.xlu0 %1358
  %v1360 = vsel %vm41, %v1356, 0.0
  %1361 = vadd.xlane.f32.xlu0 %v1360
  %v1362 = vpop.xlane.xlu0 %1361
  %v1363 = vmul.f32 %v1359, %v638
  %v1364 = vmul.f32 %v1362, %v638
  %v1365 = vsub.f32 %v1355, %v1363
  %v1366 = vsub.f32 %v1356, %v1364
  %v1367 = vmul.f32 %v1365, %v1365
  %v1368 = vmul.f32 %v1366, %v1366
  %v1369 = vsel %vm41, %v1367, 0.0
  %1370 = vadd.xlane.f32.xlu0 %v1369
  %v1371 = vpop.xlane.xlu0 %1370
  %v1372 = vsel %vm41, %v1368, 0.0
  %1373 = vadd.xlane.f32.xlu0 %v1372
  %v1374 = vpop.xlane.xlu0 %1373
  %v1375 = vmul.f32 %v1371, %v638
  %v1376 = vmul.f32 %v1374, %v638
  %v1377 = vadd.f32 %v1375, 1e-05
  %v1378 = vadd.f32 %v1376, 1e-05
  %v1379 = vrsqrt.pop %v1377
  %v1380 = vrsqrt.pop %v1378
  %v1381 = vmul.f32 %v1365, %v1379
  %v1382 = vmul.f32 %v1366, %v1380
  %v1383 = vlaneseq
  %v1384 = vshrl.u32 %v1383, 7
  %v1385 = vsub.s32 1, %v1384
  %v1386 = vrot.slane %v32, %v1385
  %v1387 = vmul.f32 %v1381, %v1386
  %v1388 = vmul.f32 %v1382, %v1386
  %v1389 = vlaneseq
  %v1390 = vshrl.u32 %v1389, 7
  %v1391 = vsub.s32 2, %v1390
  %v1392 = vrot.slane %v32, %v1391
  %v1393 = vadd.f32 %v1387, %v1392
  %v1394 = vadd.f32 %v1388, %v1392
  %s1395 = scalar_lea.vmem %s4, 320
  %v1396 = vld [vmem:[%s1395] sm:$0xff]
  %v1397 = vld [vmem:[%s1395 + $0x8] sm:$0xff]
  %v1398 = vld [vmem:[%s1395 + $0x10] sm:$0xff]
  %v1399 = vld [vmem:[%s1395 + $0x18] sm:$0xff]
  %v1400 = vlaneseq
  %v1401 = vshrl.u32 %v1400, 7
  %v1402 = vsub.s32 5, %v1401
  %v1403 = vrot.slane %v31, %v1402
  %v1405 = vsel %vm41, %v1393, 0
  %v1408 = vsel %vm41, %v1394, 0
  %1410 = vmatprep.subr.mxu0 0.0
  %1411 = vmatpush1.msra.mxu0 %v1396
  %1412 = vmatprep.subr.mxu0 0.0
  %1413 = vmatpush1.msra.mxu0 %v1397
  %1414 = vmatprep.subr.mxu0 0.0
  %1415 = vmatpush1.msra.mxu0 %v1398
  %1416 = vmatprep.subr.mxu0 0.0
  %1417 = vmatpush1.msra.mxu0 %v1399
  %1418 = vmatprep.subr.mxu0 0.0
  %1419 = vmatpush1.msra.mxu0 0.0
  %1420 = vmatprep.subr.mxu0 0.0
  %1421 = vmatpush1.msra.mxu0 0.0
  %1422 = vmatprep.subr.mxu0 0.0
  %1423 = vmatpush1.msra.mxu0 0.0
  %1424 = vmatprep.subr.mxu0 0.0
  %1425 = vmatpush1.msra.mxu0 0.0
  %1426 = vmatprep.subr.mxu0 0.0
  %1427 = vmatpush1.msra.mxu0 0.0
  %1428 = vmatprep.subr.mxu0 0.0
  %1429 = vmatpush1.msra.mxu0 0.0
  %1430 = vmatprep.subr.mxu0 0.0
  %1431 = vmatpush1.msra.mxu0 0.0
  %1432 = vmatprep.subr.mxu0 0.0
  %1433 = vmatpush1.msra.mxu0 0.0
  %1434 = vmatprep.subr.mxu0 0.0
  %1435 = vmatpush1.msra.mxu0 0.0
  %1436 = vmatprep.subr.mxu0 0.0
  %1437 = vmatpush1.msra.mxu0 0.0
  %1438 = vmatprep.subr.mxu0 0.0
  %1439 = vmatpush1.msra.mxu0 0.0
  %1440 = vmatprep.subr.mxu0 0.0
  %1441 = vmatpush1.msra.mxu0 0.0
  %1442 = vmatprep.subr.mxu0 0.0
  %1443 = vmatpush1.msra.mxu0 0.0
  %1444 = vmatprep.subr.mxu0 0.0
  %1445 = vmatpush1.msra.mxu0 0.0
  %1446 = vmatprep.subr.mxu0 0.0
  %1447 = vmatpush1.msra.mxu0 0.0
  %1448 = vmatprep.subr.mxu0 0.0
  %1449 = vmatpush1.msra.mxu0 0.0
  %1450 = vmatprep.subr.mxu0 0.0
  %1451 = vmatpush1.msra.mxu0 0.0
  %1452 = vmatprep.subr.mxu0 0.0
  %1453 = vmatpush1.msra.mxu0 0.0
  %1454 = vmatprep.subr.mxu0 0.0
  %1455 = vmatpush1.msra.mxu0 0.0
  %1456 = vmatprep.subr.mxu0 0.0
  %1457 = vmatpush1.msra.mxu0 0.0
  %1458 = vmatprep.subr.mxu0 0.0
  %1459 = vmatpush1.msra.mxu0 0.0
  %1460 = vmatprep.subr.mxu0 0.0
  %1461 = vmatpush1.msra.mxu0 0.0
  %1462 = vmatprep.subr.mxu0 0.0
  %1463 = vmatpush1.msra.mxu0 0.0
  %1464 = vmatprep.subr.mxu0 0.0
  %1465 = vmatpush1.msra.mxu0 0.0
  %1466 = vmatprep.subr.mxu0 0.0
  %1467 = vmatpush1.msra.mxu0 0.0
  %1468 = vmatprep.subr.mxu0 0.0
  %1469 = vmatpush1.msra.mxu0 0.0
  %1470 = vmatprep.subr.mxu0 0.0
  %1471 = vmatpush1.msra.mxu0 0.0
  %1472 = vmatprep.subr.mxu0 0.0
  %1473 = vmatpush1.msra.mxu0 0.0
  %1474 = vmatprep.mubr.f32.mxu0 0.0
  %1475 = vmatmul.mubr.f32.gmra.mrb[0].mxu0 %v1405
  %v1476 = vpop.f32.mrb[0].mxu0
  %v1477 = vadd.f32 %v1403, %v1476
  %v1478 = vpop.f32.mrb[0].mxu0
  %1479 = vmatprep.mubr.f32.mxu0 0.0
  %1480 = vmatmul.mubr.f32.gmra.mrb[0].mxu0 %v1408
  %v1481 = vpop.f32.mrb[0].mxu0
  %v1482 = vadd.f32 %v1403, %v1481
  %v1483 = vpop.f32.mrb[0].mxu0
  %1484 = vdwg.mxu0
  %v1485 = vmax.f32 %v1477, 0.0
  %v1486 = vmax.f32 %v1482, 0.0
  %s1487 = scalar_lea.vmem %s4, 384
  %v1488 = vld [vmem:[%s1487] sm:$0xff]
  %v1489 = vld [vmem:[%s1487 + $0x8] sm:$0xff]
  %v1490 = vld [vmem:[%s1487 + $0x10] sm:$0xff]
  %v1491 = vld [vmem:[%s1487 + $0x18] sm:$0xff]
  %v1492 = vld [vmem:[%s1487 + $0x20] sm:$0xff]
  %v1493 = vld [vmem:[%s1487 + $0x28] sm:$0xff]
  %v1494 = vld [vmem:[%s1487 + $0x30] sm:$0xff]
  %v1495 = vld [vmem:[%s1487 + $0x38] sm:$0xff]
  %v1496 = vlaneseq
  %v1497 = vshrl.u32 %v1496, 7
  %v1498 = vsub.s32 6, %v1497
  %v1499 = vrot.slane %v31, %v1498
  %vm1500 = vcmask 523264
  %v1502 = vsel %vm1500, %v1485, 0
  %v1505 = vsel %vm1500, %v1486, 0
  %1507 = vmatprep.subr.mxu0 0.0
  %1508 = vmatpush1.msra.mxu0 %v1488
  %1509 = vmatprep.subr.mxu0 0.0
  %1510 = vmatpush1.msra.mxu0 %v1489
  %1511 = vmatprep.subr.mxu0 0.0
  %1512 = vmatpush1.msra.mxu0 %v1490
  %1513 = vmatprep.subr.mxu0 0.0
  %1514 = vmatpush1.msra.mxu0 %v1491
  %1515 = vmatprep.subr.mxu0 0.0
  %1516 = vmatpush1.msra.mxu0 %v1492
  %1517 = vmatprep.subr.mxu0 0.0
  %1518 = vmatpush1.msra.mxu0 %v1493
  %1519 = vmatprep.subr.mxu0 0.0
  %1520 = vmatpush1.msra.mxu0 %v1494
  %1521 = vmatprep.subr.mxu0 0.0
  %1522 = vmatpush1.msra.mxu0 %v1495
  %1523 = vmatprep.subr.mxu0 0.0
  %1524 = vmatpush1.msra.mxu0 0.0
  %1525 = vmatprep.subr.mxu0 0.0
  %1526 = vmatpush1.msra.mxu0 0.0
  %1527 = vmatprep.subr.mxu0 0.0
  %1528 = vmatpush1.msra.mxu0 0.0
  %1529 = vmatprep.subr.mxu0 0.0
  %1530 = vmatpush1.msra.mxu0 0.0
  %1531 = vmatprep.subr.mxu0 0.0
  %1532 = vmatpush1.msra.mxu0 0.0
  %1533 = vmatprep.subr.mxu0 0.0
  %1534 = vmatpush1.msra.mxu0 0.0
  %1535 = vmatprep.subr.mxu0 0.0
  %1536 = vmatpush1.msra.mxu0 0.0
  %1537 = vmatprep.subr.mxu0 0.0
  %1538 = vmatpush1.msra.mxu0 0.0
  %1539 = vmatprep.subr.mxu0 0.0
  %1540 = vmatpush1.msra.mxu0 0.0
  %1541 = vmatprep.subr.mxu0 0.0
  %1542 = vmatpush1.msra.mxu0 0.0
  %1543 = vmatprep.subr.mxu0 0.0
  %1544 = vmatpush1.msra.mxu0 0.0
  %1545 = vmatprep.subr.mxu0 0.0
  %1546 = vmatpush1.msra.mxu0 0.0
  %1547 = vmatprep.subr.mxu0 0.0
  %1548 = vmatpush1.msra.mxu0 0.0
  %1549 = vmatprep.subr.mxu0 0.0
  %1550 = vmatpush1.msra.mxu0 0.0
  %1551 = vmatprep.subr.mxu0 0.0
  %1552 = vmatpush1.msra.mxu0 0.0
  %1553 = vmatprep.subr.mxu0 0.0
  %1554 = vmatpush1.msra.mxu0 0.0
  %1555 = vmatprep.subr.mxu0 0.0
  %1556 = vmatpush1.msra.mxu0 0.0
  %1557 = vmatprep.subr.mxu0 0.0
  %1558 = vmatpush1.msra.mxu0 0.0
  %1559 = vmatprep.subr.mxu0 0.0
  %1560 = vmatpush1.msra.mxu0 0.0
  %1561 = vmatprep.subr.mxu0 0.0
  %1562 = vmatpush1.msra.mxu0 0.0
  %1563 = vmatprep.subr.mxu0 0.0
  %1564 = vmatpush1.msra.mxu0 0.0
  %1565 = vmatprep.subr.mxu0 0.0
  %1566 = vmatpush1.msra.mxu0 0.0
  %1567 = vmatprep.subr.mxu0 0.0
  %1568 = vmatpush1.msra.mxu0 0.0
  %1569 = vmatprep.subr.mxu0 0.0
  %1570 = vmatpush1.msra.mxu0 0.0
  %1571 = vmatprep.mubr.f32.mxu0 0.0
  %1572 = vmatmul.mubr.f32.gmra.mrb[0].mxu0 %v1502
  %v1573 = vpop.f32.mrb[0].mxu0
  %v1574 = vadd.f32 %v1499, %v1573
  %v1575 = vpop.f32.mrb[0].mxu0
  %1576 = vmatprep.mubr.f32.mxu0 0.0
  %1577 = vmatmul.mubr.f32.gmra.mrb[0].mxu0 %v1505
  %v1578 = vpop.f32.mrb[0].mxu0
  %v1579 = vadd.f32 %v1499, %v1578
  %v1580 = vpop.f32.mrb[0].mxu0
  %1581 = vdwg.mxu0
  %v1582 = vadd.f32 %v1393, %v1574
  %v1583 = vadd.f32 %v1394, %v1579
  %v1584 = vsel %vm41, %v1582, 0.0
  %1585 = vadd.xlane.f32.xlu0 %v1584
  %v1586 = vpop.xlane.xlu0 %1585
  %v1587 = vsel %vm41, %v1583, 0.0
  %1588 = vadd.xlane.f32.xlu0 %v1587
  %v1589 = vpop.xlane.xlu0 %1588
  %v1590 = vmul.f32 %v1586, %v638
  %v1591 = vmul.f32 %v1589, %v638
  %v1592 = vsub.f32 %v1582, %v1590
  %v1593 = vsub.f32 %v1583, %v1591
  %v1594 = vmul.f32 %v1592, %v1592
  %v1595 = vmul.f32 %v1593, %v1593
  %v1596 = vsel %vm41, %v1594, 0.0
  %1597 = vadd.xlane.f32.xlu0 %v1596
  %v1598 = vpop.xlane.xlu0 %1597
  %v1599 = vsel %vm41, %v1595, 0.0
  %1600 = vadd.xlane.f32.xlu0 %v1599
  %v1601 = vpop.xlane.xlu0 %1600
  %v1602 = vmul.f32 %v1598, %v638
  %v1603 = vmul.f32 %v1601, %v638
  %v1604 = vadd.f32 %v1602, 1e-05
  %v1605 = vadd.f32 %v1603, 1e-05
  %v1606 = vrsqrt.pop %v1604
  %v1607 = vrsqrt.pop %v1605
  %v1608 = vmul.f32 %v1592, %v1606
  %v1609 = vmul.f32 %v1593, %v1607
  %v1610 = vlaneseq
  %v1611 = vshrl.u32 %v1610, 7
  %v1612 = vsub.s32 3, %v1611
  %v1613 = vrot.slane %v32, %v1612
  %v1614 = vmul.f32 %v1608, %v1613
  %v1615 = vmul.f32 %v1609, %v1613
  %v1616 = vlaneseq
  %v1617 = vshrl.u32 %v1616, 7
  %v1618 = vsub.s32 4, %v1617
  %v1619 = vrot.slane %v32, %v1618
  %v1620 = vadd.f32 %v1614, %v1619
  %v1621 = vadd.f32 %v1615, %v1619
  %v1622 = vsel %vm41, %v1620, 0.0
  %1623 = vadd.xlane.f32.xlu0 %v1622
  %v1624 = vpop.xlane.xlu0 %1623
  %v1625 = vsel %vm41, %v1621, 0.0
  %1626 = vadd.xlane.f32.xlu0 %v1625
  %v1627 = vpop.xlane.xlu0 %1626
  %v1628 = vmul.f32 %v1624, %v638
  %v1629 = vmul.f32 %v1627, %v638
  %v1630 = vsub.f32 %v1620, %v1628
  %v1631 = vsub.f32 %v1621, %v1629
  %v1632 = vmul.f32 %v1630, %v1630
  %v1633 = vmul.f32 %v1631, %v1631
  %v1634 = vsel %vm41, %v1632, 0.0
  %1635 = vadd.xlane.f32.xlu0 %v1634
  %v1636 = vpop.xlane.xlu0 %1635
  %v1637 = vsel %vm41, %v1633, 0.0
  %1638 = vadd.xlane.f32.xlu0 %v1637
  %v1639 = vpop.xlane.xlu0 %1638
  %v1640 = vmul.f32 %v1636, %v638
  %v1641 = vmul.f32 %v1639, %v638
  %v1642 = vadd.f32 %v1640, 1e-05
  %v1643 = vadd.f32 %v1641, 1e-05
  %v1644 = vrsqrt.pop %v1642
  %v1645 = vrsqrt.pop %v1643
  %v1646 = vmul.f32 %v1630, %v1644
  %v1647 = vmul.f32 %v1631, %v1645
  %v1648 = vlaneseq
  %v1649 = vshrl.u32 %v1648, 7
  %v1650 = vsub.s32 5, %v1649
  %v1651 = vrot.slane %v32, %v1650
  %v1652 = vmul.f32 %v1646, %v1651
  %v1653 = vmul.f32 %v1647, %v1651
  %v1654 = vlaneseq
  %v1655 = vshrl.u32 %v1654, 7
  %v1656 = vsub.s32 6, %v1655
  %v1657 = vrot.slane %v32, %v1656
  %v1658 = vadd.f32 %v1652, %v1657
  %v1659 = vadd.f32 %v1653, %v1657
  %1660 = vst.msk [vmem:[%s6] sm:$0xff] %vm41, %v1658
  %1661 = vst.msk [vmem:[%s6 + $0x8] sm:$0xff] %vm41, %v1659
  // Predicated region
  $region26: #{time_denoising_forward.1} parent=0 // pred_check
    _
  $region27: #{time_denoising_forward.1} parent=0 // pred_check_branch
    %1663 = sbr.rel (0) target = $region29
  $region28: #{time_denoising_forward.1} parent=0 // pred_region
    _
  $region29: #{time_denoising_forward.1} parent=0 // pred_fallthru
    _
  // Predicated region
  $region30: #{time_denoising_forward.1} parent=0 // pred_check
    _
  $region31: #{time_denoising_forward.1} parent=0 // pred_check_branch
    %1665 = sbr.rel (0) target = $region33
  $region32: #{time_denoising_forward.1} parent=0 // pred_region
    _
  $region33: #{time_denoising_forward.1} parent=0 // pred_fallthru
    _

</llo_original>
